<compile_context>
chip_gen: v6e
topology: v6e:2x2x1
jax: 0.10.0
libtpu: 0.0.40
codegen_flags: <defaults>
</compile_context>

<pallas_src>
import functools

import jax
import jax.numpy as jnp
from jax import lax
from jax.experimental import pallas as pl
from jax.experimental.pallas import tpu as pltpu

EPS = 1e-6


def _time_mask(x):
    lane = lax.broadcasted_iota(jnp.int32, x.shape, x.ndim - 1)
    return lane == 0


# ---------------------------------------------------------------------------
# Pure-JAX hyperboloid helpers (faithful to the original module). Used to build
# valid inputs and as the numerical reference for the fused kernel.
# ---------------------------------------------------------------------------
def ref_proj_tan0(u, c):
    del c
    return jnp.where(_time_mask(u), 0.0, u)


def ref_logmap0(x, c):
    K = 1.0 / c
    sqrtK = K ** 0.5
    is_time = _time_mask(x)
    y = jnp.where(is_time, 0.0, x)
    y_sq = jnp.sum(y * y, axis=-1, keepdims=True)
    y_norm = jnp.sqrt(jnp.maximum(y_sq, EPS))
    x0 = jnp.sum(jnp.where(is_time, x, 0.0), axis=-1, keepdims=True)
    z = jnp.maximum(x0 / sqrtK, 1.0 + EPS)
    arccosh_z = jnp.log(z + jnp.sqrt(z * z - 1.0))
    return sqrtK * arccosh_z * y / y_norm


def ref_expmap0(u, c):
    K = 1.0 / c
    sqrtK = K ** 0.5
    is_time = _time_mask(u)
    y = jnp.where(is_time, 0.0, u)
    y_sq = jnp.sum(y * y, axis=-1, keepdims=True)
    y_norm = jnp.sqrt(jnp.maximum(y_sq, EPS))
    theta = y_norm / sqrtK
    cosh_t = 0.5 * (jnp.exp(theta) + jnp.exp(-theta))
    sinh_t = 0.5 * (jnp.exp(theta) - jnp.exp(-theta))
    time = sqrtK * cosh_t
    space = sqrtK * sinh_t * y / y_norm
    return jnp.where(is_time, time, space)


def ref_proj(x, c):
    K = 1.0 / c
    is_time = _time_mask(x)
    y = jnp.where(is_time, 0.0, x)
    y_sq = jnp.sum(y * y, axis=-1, keepdims=True)
    time = jnp.sqrt(jnp.maximum(K + y_sq, EPS))
    return jnp.where(is_time, time, y)


def reference_forward(x, adj, W, b, c_in, c_out):
    """Original (un-simplified) LorentzGNN forward, full f32, for validation."""
    hi = lax.Precision.HIGHEST
    # LorentzLinear (tangent-space bias, see TODO above)
    u = ref_logmap0(x, c_in)
    mu = jnp.dot(u, W.T, precision=hi) + b[None, :]
    mu = ref_proj_tan0(mu, c_in)
    h = ref_proj(ref_expmap0(mu, c_in), c_in)
    # LorentzAgg (use_att=False)
    ht = ref_logmap0(h, c_in)
    st = jnp.dot(adj, ht, precision=hi)
    h2 = ref_proj(ref_expmap0(st, c_in), c_in)
    # LorentzAct (ReLU)
    a = jnp.maximum(ref_logmap0(h2, c_in), 0.0)
    a = ref_proj_tan0(a, c_out)
    return ref_proj(ref_expmap0(a, c_out), c_out)


# ---------------------------------------------------------------------------
# Fused kernel: (LorentzLinear recompute per k-slab) -> bf16 aggregation matmul
#               -> (ReLU in tangent + expmap0/proj at c_out) finalize.
# Grid (i, k): i = output row tile, k = contraction (neighbor) tile.
# ---------------------------------------------------------------------------
def lorentz_gnn_kernel(adj_ref, x_ref, wt_ref, b_ref, out_ref, acc_ref, *, c_in, c_out):
    k = pl.program_id(1)

    @pl.when(k == 0)
    def _():
        acc_ref[...] = jnp.zeros_like(acc_ref)

    # ---- Stage 1 recompute (cheap: D_in-deep matmul over a (tile_n, D_in) slab) ----
    # ht_k = proj_tan0( logmap0(x_k, c_in) @ W^T + b )
    #      == logmap0(LorentzLinear(x_k)) after round-trip elimination.
    x = x_ref[...]                                             # (TN, D_in) f32
    K_in = 1.0 / c_in
    sqrtK_in = K_in ** 0.5
    in_time = lax.broadcasted_iota(jnp.int32, x.shape, 1) == 0
    y = jnp.where(in_time, 0.0, x)
    y_sq = jnp.sum(y * y, axis=-1, keepdims=True)
    y_norm = jnp.sqrt(jnp.maximum(y_sq, EPS))
    x0 = x[:, 0:1]                                             # static lane-0 slice
    z = jnp.maximum(x0 / sqrtK_in, 1.0 + EPS)
    arccosh_z = jnp.log(z + jnp.sqrt(z * z - 1.0))
    u = (sqrtK_in * arccosh_z / y_norm) * y

    mu = jnp.dot(u, wt_ref[...], preferred_element_type=jnp.float32) + b_ref[...]

    # Hoisted lane-0 mask at output width; reused by the epilogue below.
    is_time = lax.broadcasted_iota(jnp.int32, mu.shape, 1) == 0
    ht = jnp.where(is_time, 0.0, mu)                           # proj_tan0

    # ---- Stage 2: native-bf16 MXU pass, f32 accumulation --------------------
    acc_ref[...] += jnp.dot(adj_ref[...], ht.astype(jnp.bfloat16),
                            preferred_element_type=jnp.float32)

    # ---- Finalize: LorentzAct (ReLU in tangent space, remap at c_out) -------
    @pl.when(k == pl.num_programs(1) - 1)
    def _():
        st = acc_ref[...]
        a = jnp.where(is_time, 0.0, jnp.maximum(st, 0.0))
        K_out = 1.0 / c_out
        sqrtK_out = K_out ** 0.5
        a_sq = jnp.sum(a * a, axis=-1, keepdims=True)
        a_nsq = jnp.maximum(a_sq, EPS)
        a_norm = jnp.sqrt(a_nsq)
        theta = a_norm / sqrtK_out
        e_p = jnp.exp(theta)
        e_m = jnp.exp(-theta)          # exact; epilogue runs once per row tile
        sinh_t = 0.5 * (e_p - e_m)
        space = (sqrtK_out * sinh_t / a_norm) * a
        # proj: time = sqrt(K + ||space||^2), ||space||^2 == K*sinh^2*a_sq/max(a_sq,EPS)
        sp_sq = K_out * sinh_t * sinh_t * (a_sq / a_nsq)
        time = jnp.sqrt(jnp.maximum(K_out + sp_sq, EPS))
        out_ref[...] = jnp.where(is_time, time, space).astype(out_ref.dtype)


# ---------------------------------------------------------------------------
# Wrapper
# ---------------------------------------------------------------------------
def lorentz_gnn_forward(x, adj, W, b, c_in, c_out, *, tile_n=128):
    """x: (N, D_in) hyperboloid pts, adj: (N, N) row-normalized, W: (D_out, D_in), b: (D_out,).

    tile_n=128 is native for v5e; prefer 256 on v6e/v7x for large graphs (keep N_pad/tile_n >= 2
    so the 'parallel' row axis can shard across v7x's two TensorCores)."""
    N, D_in = x.shape
    D_out = W.shape[0]

    # Lane-dense feature dim (multiple of 128) and node dim padded to the tile.
    D_pad = ((D_out + 127) // 128) * 128
    N_pad = ((N + tile_n - 1) // tile_n) * tile_n
    nm = N_pad // tile_n

    x_p = jnp.pad(x.astype(jnp.float32), ((0, N_pad - N), (0, 0)))
    adj_p = jnp.pad(adj, ((0, N_pad - N), (0, N_pad - N))).astype(jnp.bfloat16)
    wt_p = jnp.pad(W.T.astype(jnp.float32), ((0, 0), (0, D_pad - D_out)))
    b_p = jnp.pad(b.astype(jnp.float32).reshape(1, D_out), ((0, 0), (0, D_pad - D_out)))

    vmem_limit = 32 * 1024 * 1024  # safe on v5e/v6e/v7x; tiles here use well under 1 MiB

    out_p = pl.pallas_call(
        functools.partial(lorentz_gnn_kernel, c_in=float(c_in), c_out=float(c_out)),
        out_shape=jax.ShapeDtypeStruct((N_pad, D_pad), jnp.float32),
        grid_spec=pltpu.PrefetchScalarGridSpec(
            num_scalar_prefetch=0,
            grid=(nm, nm),
            in_specs=[
                pl.BlockSpec((tile_n, tile_n), lambda i, k: (i, k)),   # adj tile (bf16)
                pl.BlockSpec((tile_n, D_in), lambda i, k: (k, 0)),     # x k-slab
                pl.BlockSpec((D_in, D_pad), lambda i, k: (0, 0)),      # W^T (resident)
                pl.BlockSpec((1, D_pad), lambda i, k: (0, 0)),         # bias (resident)
            ],
            out_specs=pl.BlockSpec((tile_n, D_pad), lambda i, k: (i, 0)),
            scratch_shapes=[pltpu.VMEM((tile_n, D_pad), jnp.float32)],
        ),
        compiler_params=pltpu.CompilerParams(
            dimension_semantics=("parallel", "arbitrary"),
            vmem_limit_bytes=vmem_limit,
        ),
    )(adj_p, x_p, wt_p, b_p)

    return out_p[:N, :D_out]


if __name__ == "__main__":
    key = jax.random.PRNGKey(0)
    k_feat, k_adj, k_w, k_b = jax.random.split(key, 4)

    N = 256         # number of graph nodes (exercises a real 2x2 fused grid)
    D_IN = 8        # input feature dim (includes Lorentz time coordinate)
    D_OUT = 8       # output feature dim
    C_IN = 1.0      # input curvature
    C_OUT = 0.5     # output curvature

    # Valid hyperboloid input points: zero the time coord, then expmap0 + proj.
    feat = 0.5 * jax.random.normal(k_feat, (N, D_IN), dtype=jnp.float32)
    feat_tan = ref_proj_tan0(feat, C_IN)
    x = ref_proj(ref_expmap0(feat_tan, C_IN), C_IN)

    # Row-normalized adjacency with self-loops.
    a = (jax.random.uniform(k_adj, (N, N)) < 0.05).astype(jnp.float32)
    a = a + jnp.eye(N, dtype=jnp.float32)
    adj = a / jnp.sum(a, axis=1, keepdims=True)

    # Deterministic LorentzLinear parameters (xavier-ish scale).
    W = jax.random.normal(k_w, (D_OUT, D_IN), dtype=jnp.float32) * (1.0 / (D_IN ** 0.5))
    b = 0.01 * jax.random.normal(k_b, (D_OUT,), dtype=jnp.float32)

    out = lorentz_gnn_forward(x, adj, W, b, C_IN, C_OUT)
    out = jax.block_until_ready(out)

    # Pure-JAX reference on the same bf16-rounded adjacency the kernel streams.
    # Tolerance accounts for the bf16 ht quantization in the MXU pass, MXU pass
    # emulation and EPS-clamp path differences of the fused/simplified kernel math.
    adj_q = adj.astype(jnp.bfloat16).astype(jnp.float32)
    ref = reference_forward(x, adj_q, W, b, C_IN, C_OUT)

    assert out.shape == (N, D_OUT)
    assert bool(jnp.all(jnp.isfinite(out)))
    max_err = float(jnp.max(jnp.abs(out - ref)))
    assert bool(jnp.allclose(out, ref, rtol=2e-2, atol=2e-2)), max_err
    print("KERNEL_OK")
</pallas_src>

<mosaic_0001>
module attributes {stable_mosaic.version = 11 : i64} {
  func.func @lorentz_gnn_kernel(%arg0: i32, %arg1: i32, %arg2: memref<128x128xbf16, #tpu.memory_space<vmem>>, %arg3: memref<128x8xf32, #tpu.memory_space<vmem>>, %arg4: memref<8x128xf32, #tpu.memory_space<vmem>>, %arg5: memref<1x128xf32, #tpu.memory_space<vmem>>, %arg6: memref<128x128xf32, #tpu.memory_space<vmem>>, %arg7: memref<128x128xf32, #tpu.memory_space<vmem>>) attributes {dimension_semantics = [#tpu.dimension_semantics<parallel>, #tpu.dimension_semantics<arbitrary>], iteration_bounds = array<i64: 2, 2>, scalar_prefetch = 0 : i64, scratch_operands = 1 : i64, tpu.core_type = #tpu.core_type<tc>, window_params = [{transform_indices = @transform_0, window_bounds = array<i64: 128, 128>}, {transform_indices = @transform_1, window_bounds = array<i64: 128, 8>}, {pipeline_mode = #tpu.pipeline_mode<synchronous>, transform_indices = @transform_2, window_bounds = array<i64: 8, 128>}, {pipeline_mode = #tpu.pipeline_mode<synchronous>, transform_indices = @transform_3, window_bounds = array<i64: 1, 128>}, {transform_indices = @transform_4, window_bounds = array<i64: 128, 128>}]} {
    %c0_i32 = arith.constant 0 : i32
    %0 = arith.cmpi eq, %arg1, %c0_i32 : i32
    %1 = arith.extui %0 : i1 to i32
    %c0_i32_0 = arith.constant 0 : i32
    %2 = arith.cmpi ne, %1, %c0_i32_0 : i32
    scf.if %2 {
      %cst_24 = arith.constant 0.000000e+00 : f32
      %50 = vector.broadcast %cst_24 : f32 to vector<128x128xf32>
      %c0_25 = arith.constant 0 : index
      %c0_26 = arith.constant 0 : index
      %51 = vector.load %arg7[%c0_25, %c0_26] : memref<128x128xf32, #tpu.memory_space<vmem>>, vector<128x128xf32>
      tpu.vector_store %arg7[%c0_25, %c0_26], %50 {strides = array<i32>} : memref<128x128xf32, #tpu.memory_space<vmem>>, vector<128x128xf32>,
    } else {
    }
    %c0 = arith.constant 0 : index
    %c0_1 = arith.constant 0 : index
    %3 = vector.load %arg3[%c0, %c0_1] : memref<128x8xf32, #tpu.memory_space<vmem>>, vector<128x8xf32>
    %4 = tpu.iota {dimensions = array<i32: 1>} : vector<128x8xi32>
    %c0_i32_2 = arith.constant 0 : i32
    %5 = vector.broadcast %c0_i32_2 : i32 to vector<128x8xi32>
    %6 = arith.cmpi eq, %4, %5 : vector<128x8xi32>
    %cst = arith.constant 0.000000e+00 : f32
    %7 = vector.broadcast %cst : f32 to vector<128x8xf32>
    %8 = arith.select %6, %7, %3 : vector<128x8xi1>, vector<128x8xf32>
    %9 = arith.mulf %8, %8 : vector<128x8xf32>
    %cst_3 = arith.constant dense<0.000000e+00> : vector<128xf32>
    %10 = vector.multi_reduction <add>, %9, %cst_3 [1] : vector<128x8xf32> to vector<128xf32>
    %11 = vector.shape_cast %10 : vector<128xf32> to vector<128x1xf32>
    %cst_4 = arith.constant 9.99999997E-7 : f32
    %12 = vector.broadcast %cst_4 : f32 to vector<128x1xf32>
    %13 = arith.maximumf %11, %12 : vector<128x1xf32>
    %14 = math.sqrt %13 : vector<128x1xf32>
    %15 = vector.extract_strided_slice %3 {offsets = [0, 0], sizes = [128, 1], strides = [1, 1]} : vector<128x8xf32> to vector<128x1xf32>
    %cst_5 = arith.constant 1.000000e+00 : f32
    %16 = vector.broadcast %cst_5 : f32 to vector<128x1xf32>
    %17 = arith.divf %15, %16 : vector<128x1xf32>
    %cst_6 = arith.constant 1.00000095 : f32
    %18 = vector.broadcast %cst_6 : f32 to vector<128x1xf32>
    %19 = arith.maximumf %17, %18 : vector<128x1xf32>
    %20 = arith.mulf %19, %19 : vector<128x1xf32>
    %cst_7 = arith.constant 1.000000e+00 : f32
    %21 = vector.broadcast %cst_7 : f32 to vector<128x1xf32>
    %22 = arith.subf %20, %21 : vector<128x1xf32>
    %23 = math.sqrt %22 : vector<128x1xf32>
    %24 = arith.addf %19, %23 : vector<128x1xf32>
    %25 = math.log %24 : vector<128x1xf32>
    %cst_8 = arith.constant 1.000000e+00 : f32
    %26 = vector.broadcast %cst_8 : f32 to vector<128x1xf32>
    %27 = arith.mulf %26, %25 : vector<128x1xf32>
    %28 = arith.divf %27, %14 : vector<128x1xf32>
    %29 = vector.broadcast %28 : vector<128x1xf32> to vector<128x8xf32>
    %30 = arith.mulf %29, %8 : vector<128x8xf32>
    %c0_9 = arith.constant 0 : index
    %c0_10 = arith.constant 0 : index
    %31 = vector.load %arg4[%c0_9, %c0_10] : memref<8x128xf32, #tpu.memory_space<vmem>>, vector<8x128xf32>
    %cst_11 = arith.constant dense<0.000000e+00> : vector<128x128xf32>
    %32 = tpu.matmul %30, %31, %cst_11 {dimension_numbers = #tpu.dot_dimension_numbers<[1], [0], [0], [1], [0, 0, 1, 1], [], []>} : vector<128x8xf32>, vector<8x128xf32>, vector<128x128xf32> -> vector<128x128xf32>
    %c0_12 = arith.constant 0 : index
    %c0_13 = arith.constant 0 : index
    %33 = vector.load %arg5[%c0_12, %c0_13] : memref<1x128xf32, #tpu.memory_space<vmem>>, vector<1x128xf32>
    %34 = vector.broadcast %33 : vector<1x128xf32> to vector<128x128xf32>
    %35 = arith.addf %32, %34 : vector<128x128xf32>
    %36 = tpu.iota {dimensions = array<i32: 1>} : vector<128x128xi32>
    %c0_i32_14 = arith.constant 0 : i32
    %37 = vector.broadcast %c0_i32_14 : i32 to vector<128x128xi32>
    %38 = arith.cmpi eq, %36, %37 : vector<128x128xi32>
    %cst_15 = arith.constant 0.000000e+00 : f32
    %39 = vector.broadcast %cst_15 : f32 to vector<128x128xf32>
    %40 = arith.select %38, %39, %35 : vector<128x128xi1>, vector<128x128xf32>
    %c0_16 = arith.constant 0 : index
    %c0_17 = arith.constant 0 : index
    %41 = vector.load %arg7[%c0_16, %c0_17] : memref<128x128xf32, #tpu.memory_space<vmem>>, vector<128x128xf32>
    %c0_18 = arith.constant 0 : index
    %c0_19 = arith.constant 0 : index
    %42 = vector.load %arg2[%c0_18, %c0_19] : memref<128x128xbf16, #tpu.memory_space<vmem>>, vector<128x128xbf16>
    %43 = arith.truncf %40 : vector<128x128xf32> to vector<128x128xbf16>
    %cst_20 = arith.constant dense<0.000000e+00> : vector<128x128xf32>
    %44 = tpu.matmul %42, %43, %cst_20 {dimension_numbers = #tpu.dot_dimension_numbers<[1], [0], [0], [1], [0, 0, 1, 1], [], []>} : vector<128x128xbf16>, vector<128x128xbf16>, vector<128x128xf32> -> vector<128x128xf32>
    %45 = arith.addf %41, %44 : vector<128x128xf32>
    %c0_21 = arith.constant 0 : index
    %c0_22 = arith.constant 0 : index
    %46 = vector.load %arg7[%c0_21, %c0_22] : memref<128x128xf32, #tpu.memory_space<vmem>>, vector<128x128xf32>
    tpu.vector_store %arg7[%c0_21, %c0_22], %45 {strides = array<i32>} : memref<128x128xf32, #tpu.memory_space<vmem>>, vector<128x128xf32>,
    %c1_i32 = arith.constant 1 : i32
    %47 = arith.cmpi eq, %arg1, %c1_i32 : i32
    %48 = arith.extui %47 : i1 to i32
    %c0_i32_23 = arith.constant 0 : i32
    %49 = arith.cmpi ne, %48, %c0_i32_23 : i32
    scf.if %49 {
      %c0_24 = arith.constant 0 : index
      %c0_25 = arith.constant 0 : index
      %50 = vector.load %arg7[%c0_24, %c0_25] : memref<128x128xf32, #tpu.memory_space<vmem>>, vector<128x128xf32>
      %cst_26 = arith.constant 0.000000e+00 : f32
      %51 = vector.broadcast %cst_26 : f32 to vector<128x128xf32>
      %52 = arith.maximumf %50, %51 : vector<128x128xf32>
      %cst_27 = arith.constant 0.000000e+00 : f32
      %53 = vector.broadcast %cst_27 : f32 to vector<128x128xf32>
      %54 = arith.select %38, %53, %52 : vector<128x128xi1>, vector<128x128xf32>
      %55 = arith.mulf %54, %54 : vector<128x128xf32>
      %cst_28 = arith.constant dense<0.000000e+00> : vector<128xf32>
      %56 = vector.multi_reduction <add>, %55, %cst_28 [1] : vector<128x128xf32> to vector<128xf32>
      %57 = vector.shape_cast %56 : vector<128xf32> to vector<128x1xf32>
      %cst_29 = arith.constant 9.99999997E-7 : f32
      %58 = vector.broadcast %cst_29 : f32 to vector<128x1xf32>
      %59 = arith.maximumf %57, %58 : vector<128x1xf32>
      %60 = math.sqrt %59 : vector<128x1xf32>
      %cst_30 = arith.constant 1.41421354 : f32
      %61 = vector.broadcast %cst_30 : f32 to vector<128x1xf32>
      %62 = arith.divf %60, %61 : vector<128x1xf32>
      %63 = math.exp %62 : vector<128x1xf32>
      %cst_31 = arith.constant 0.000000e+00 : f32
      %64 = vector.broadcast %cst_31 : f32 to vector<128x1xf32>
      %65 = arith.subf %64, %62 : vector<128x1xf32>
      %66 = math.exp %65 : vector<128x1xf32>
      %67 = arith.subf %63, %66 : vector<128x1xf32>
      %cst_32 = arith.constant 5.000000e-01 : f32
      %68 = vector.broadcast %cst_32 : f32 to vector<128x1xf32>
      %69 = arith.mulf %68, %67 : vector<128x1xf32>
      %cst_33 = arith.constant 1.41421354 : f32
      %70 = vector.broadcast %cst_33 : f32 to vector<128x1xf32>
      %71 = arith.mulf %70, %69 : vector<128x1xf32>
      %72 = arith.divf %71, %60 : vector<128x1xf32>
      %73 = vector.broadcast %72 : vector<128x1xf32> to vector<128x128xf32>
      %74 = arith.mulf %73, %54 : vector<128x128xf32>
      %cst_34 = arith.constant 2.000000e+00 : f32
      %75 = vector.broadcast %cst_34 : f32 to vector<128x1xf32>
      %76 = arith.mulf %75, %69 : vector<128x1xf32>
      %77 = arith.mulf %76, %69 : vector<128x1xf32>
      %78 = arith.divf %57, %59 : vector<128x1xf32>
      %79 = arith.mulf %77, %78 : vector<128x1xf32>
      %cst_35 = arith.constant 2.000000e+00 : f32
      %80 = vector.broadcast %cst_35 : f32 to vector<128x1xf32>
      %81 = arith.addf %80, %79 : vector<128x1xf32>
      %cst_36 = arith.constant 9.99999997E-7 : f32
      %82 = vector.broadcast %cst_36 : f32 to vector<128x1xf32>
      %83 = arith.maximumf %81, %82 : vector<128x1xf32>
      %84 = math.sqrt %83 : vector<128x1xf32>
      %85 = vector.shape_cast %84 : vector<128x1xf32> to vector<128x1xf32>
      %86 = vector.broadcast %85 : vector<128x1xf32> to vector<128x128xf32>
      %87 = arith.select %38, %86, %74 : vector<128x128xi1>, vector<128x128xf32>
      %c0_37 = arith.constant 0 : index
      %c0_38 = arith.constant 0 : index
      %88 = vector.load %arg6[%c0_37, %c0_38] : memref<128x128xf32, #tpu.memory_space<vmem>>, vector<128x128xf32>
      tpu.vector_store %arg6[%c0_37, %c0_38], %87 {strides = array<i32>} : memref<128x128xf32, #tpu.memory_space<vmem>>, vector<128x128xf32>,
    } else {
    }
    return
  }
  func.func @transform_0(%arg0: i32, %arg1: i32) -> (i32, i32) {
    %c0_i32 = arith.constant 0 : i32
    return %arg0, %arg1 : i32, i32
  }
  func.func @transform_1(%arg0: i32, %arg1: i32) -> (i32, i32) {
    %c0_i32 = arith.constant 0 : i32
    %c0_i32_0 = arith.constant 0 : i32
    return %arg1, %c0_i32 : i32, i32
  }
  func.func @transform_2(%arg0: i32, %arg1: i32) -> (i32, i32) {
    %c0_i32 = arith.constant 0 : i32
    %c0_i32_0 = arith.constant 0 : i32
    %c0_i32_1 = arith.constant 0 : i32
    return %c0_i32, %c0_i32_0 : i32, i32
  }
  func.func @transform_3(%arg0: i32, %arg1: i32) -> (i32, i32) {
    %c0_i32 = arith.constant 0 : i32
    %c0_i32_0 = arith.constant 0 : i32
    %c0_i32_1 = arith.constant 0 : i32
    return %c0_i32, %c0_i32_0 : i32, i32
  }
  func.func @transform_4(%arg0: i32, %arg1: i32) -> (i32, i32) {
    %c0_i32 = arith.constant 0 : i32
    %c0_i32_0 = arith.constant 0 : i32
    return %arg0, %c0_i32 : i32, i32
  }
}

</mosaic_0001>

<llo_original>
// kernel: tpu_custom_call.1
$region0: #{tpu_custom_call.1}
  #allocation0 [shape = 'u32[]', space=smem, size = 0x4, offset = 0x4, fixed_abs, tag = 'smem constant byte address 0x4 - core index']
  #allocation1 [shape = 'u32[144,128]{1,0:T(1,128)}', space=vmem, size = 0x12000, scoped, tag = 'internal scratch']
  #allocation2 [shape = 'f32[128,128]{1,0:T(8,128)}', space=vmem, size = 0x10000, scoped, tag = 'scratch operand']
  %s0 = inlined_call_operand.vmem [shape: bf16[256,256], index: 0, kind: input, shape index: {}]
  %s1 = inlined_call_operand.vmem [shape: f32[256,8], index: 1, kind: input, shape index: {}]
  %s2 = inlined_call_operand.vmem [shape: f32[8,128], index: 2, kind: input, shape index: {}]
  %s3 = inlined_call_operand.vmem [shape: f32[1,128], index: 3, kind: input, shape index: {}]
  %s4 = inlined_call_operand.hbm [shape: f32[256,128], index: 4, kind: output, shape index: {}]
  %s5 = sld [smem:[#allocation0]]
  $region98: #{tpu_custom_call.1} parent=0
    _
  %s7 = ssub.s32 1, %s5
  %s8 = scalar_select 0, %s7, %s5
  $region1: #{tpu_custom_call.1} parent=0
    #allocation3 [shape = 'u8[65536]{0}', space=vmem, size = 0x10000, scoped, tag = 'input window, operand 0']
    #allocation4 [shape = 'u8[131072]{0}', space=vmem, size = 0x20000, scoped, tag = 'output window, operand 0']
    #allocation5 [shape = 's32[2]{0}', space=sflag, size = 0x8, scoped, tag = 'scoped memory for tpu_custom_call.1']
    %9 = vsyncpa [#allocation5], 0
    %s10 = scalar_lea.sflag [#allocation5], 1
    %11 = vsyncpa %s10, 0
    loop: start=0, step=1, limit=6
    $region2: #{tpu_custom_call.1} parent=1 // loop_pre_header
      _
    $region3: #{tpu_custom_call.1} parent=1 // loop_header
      %s13 = sphi 0, %s17
      %p14 = scmp.ge.s32.totalorder %s13, 6
      %s20 = sphi 0, %s32
      %s21 = sphi 0, %s28
      %s22 = sphi 0, %s20
      %s23 = sphi 0, %s21
      %s24 = sphi 0, %s22
      %s25 = sphi 0, %s23
      %s37 = sphi 0, %s39
      %s40 = sphi 0, %s37
      %s41 = sphi 0, %s40
      %s57 = sphi 0, %s41
      %s63 = sphi 0, %s65
      %s66 = sphi 0, %s63
      %s67 = sphi 0, %s66
      %s83 = sphi 0, %s67
      %s87 = sphi 0, %s87
      %s89 = sphi 0, %s87
      %s90 = sphi 0, %s89
      %s104 = sphi 0, %s90
      %s108 = sphi 0, %s108
      %s110 = sphi 0, %s108
      %s111 = sphi 0, %s110
      %s125 = sphi 0, %s111
      %s131 = sphi 0, %s133
      %s134 = sphi 0, %s131
      %s135 = sphi 0, %s134
      %s151 = sphi 0, %s135
    $region4: #{tpu_custom_call.1} parent=1 // loop_header_branch
      %16 = sbr.rel (%p14) target = $region8
    $region5: #{tpu_custom_call.1} parent=1 // loop_body
      %s18 = ssub.s32 %s13, 1
      %s19 = ssub.s32 %s13, 2
      %s26 = sadd.s32 1, %s21
      %p27 = scmp.ge.s32.totalorder %s26, 2
      %s28 = scalar_select %p27, 0, %s26
      %s29 = sadd.s32 1, %s20
      %s30 = scalar_select %p27, %s29, %s20
      %p31 = scmp.ge.s32.totalorder %s30, 2
      %s32 = scalar_select %p31, 0, %s30
      %s33 = ssub.s32 %s20, %s32
      %s34 = ssub.s32 %s21, %s28
      %s35 = sor.u32 %s33, %s34
      %p36 = scmp.eq.s32.totalorder %s35, 0
      %s38 = sadd.s32 %s37, 1
      %s39 = scalar_select %p36, %s37, %s38
      %p42 = pneg %p36
      %p43 = scmp.eq.s32.totalorder %s13, 3
      %p44 = por %p42, %p43
      %p45 = scmp.ne.s32.totalorder %s37, %s40
      %p46 = scmp.eq.s32.totalorder %s13, 0
      %p47 = por %p45, %p46
      %p48 = scmp.ne.s32.totalorder %s37, %s40
      %p49 = scmp.eq.s32.totalorder %s18, 3
      %p50 = por %p48, %p49
      %p51 = scmp.ne.s32.totalorder %s40, %s41
      %p52 = scmp.eq.s32.totalorder %s18, 0
      %p53 = por %p51, %p52
      %p54 = scmp.ne.s32.totalorder %s40, %s41
      %p55 = scmp.eq.s32.totalorder %s19, 3
      %p56 = por %p54, %p55
      %p58 = scmp.ne.s32.totalorder %s41, %s57
      %p59 = scmp.eq.s32.totalorder %s19, 0
      %p60 = por %p58, %p59
      %s61 = ssub.s32 %s21, %s28
      %p62 = scmp.eq.s32.totalorder %s61, 0
      %s64 = sadd.s32 %s63, 1
      %s65 = scalar_select %p62, %s63, %s64
      %p68 = pneg %p62
      %p69 = scmp.eq.s32.totalorder %s13, 3
      %p70 = por %p68, %p69
      %p71 = scmp.ne.s32.totalorder %s63, %s66
      %p72 = scmp.eq.s32.totalorder %s13, 0
      %p73 = por %p71, %p72
      %p74 = scmp.ne.s32.totalorder %s63, %s66
      %p75 = scmp.eq.s32.totalorder %s18, 3
      %p76 = por %p74, %p75
      %p77 = scmp.ne.s32.totalorder %s66, %s67
      %p78 = scmp.eq.s32.totalorder %s18, 0
      %p79 = por %p77, %p78
      %p80 = scmp.ne.s32.totalorder %s66, %s67
      %p81 = scmp.eq.s32.totalorder %s19, 3
      %p82 = por %p80, %p81
      %p84 = scmp.ne.s32.totalorder %s67, %s83
      %p85 = scmp.eq.s32.totalorder %s19, 0
      %p86 = por %p84, %p85
      %s88 = sadd.s32 %s87, 1
      %p91 = scmp.eq.s32.totalorder %s13, 3
      %p92 = scmp.ne.s32.totalorder %s87, %s89
      %p93 = scmp.eq.s32.totalorder %s13, 0
      %p94 = por %p92, %p93
      %p95 = scmp.ne.s32.totalorder %s87, %s89
      %p96 = scmp.eq.s32.totalorder %s18, 3
      %p97 = por %p95, %p96
      %p98 = scmp.ne.s32.totalorder %s89, %s90
      %p99 = scmp.eq.s32.totalorder %s18, 0
      %p100 = por %p98, %p99
      %p101 = scmp.ne.s32.totalorder %s89, %s90
      %p102 = scmp.eq.s32.totalorder %s19, 3
      %p103 = por %p101, %p102
      %p105 = scmp.ne.s32.totalorder %s90, %s104
      %p106 = scmp.eq.s32.totalorder %s19, 0
      %p107 = por %p105, %p106
      %s109 = sadd.s32 %s108, 1
      %p112 = scmp.eq.s32.totalorder %s13, 3
      %p113 = scmp.ne.s32.totalorder %s108, %s110
      %p114 = scmp.eq.s32.totalorder %s13, 0
      %p115 = por %p113, %p114
      %p116 = scmp.ne.s32.totalorder %s108, %s110
      %p117 = scmp.eq.s32.totalorder %s18, 3
      %p118 = por %p116, %p117
      %p119 = scmp.ne.s32.totalorder %s110, %s111
      %p120 = scmp.eq.s32.totalorder %s18, 0
      %p121 = por %p119, %p120
      %p122 = scmp.ne.s32.totalorder %s110, %s111
      %p123 = scmp.eq.s32.totalorder %s19, 3
      %p124 = por %p122, %p123
      %p126 = scmp.ne.s32.totalorder %s111, %s125
      %p127 = scmp.eq.s32.totalorder %s19, 0
      %p128 = por %p126, %p127
      %s129 = ssub.s32 %s20, %s32
      %p130 = scmp.eq.s32.totalorder %s129, 0
      %s132 = sadd.s32 %s131, 1
      %s133 = scalar_select %p130, %s131, %s132
      %p136 = pneg %p130
      %p137 = scmp.eq.s32.totalorder %s13, 3
      %p138 = por %p136, %p137
      %p139 = scmp.ne.s32.totalorder %s131, %s134
      %p140 = scmp.eq.s32.totalorder %s13, 0
      %p141 = por %p139, %p140
      %p142 = scmp.ne.s32.totalorder %s131, %s134
      %p143 = scmp.eq.s32.totalorder %s18, 3
      %p144 = por %p142, %p143
      %p145 = scmp.ne.s32.totalorder %s134, %s135
      %p146 = scmp.eq.s32.totalorder %s18, 0
      %p147 = por %p145, %p146
      %p148 = scmp.ne.s32.totalorder %s134, %s135
      %p149 = scmp.eq.s32.totalorder %s19, 3
      %p150 = por %p148, %p149
      %p152 = scmp.ne.s32.totalorder %s135, %s151
      %p153 = scmp.eq.s32.totalorder %s19, 0
      %p154 = por %p152, %p153
      %p155 = scmp.le.s32.totalorder 1, %s13
      %p156 = scmp.lt.s32.totalorder %s13, 5
      %p157 = pnand %p155, %p156
      %p158 = pneg %p157
      // Predicated region
      $region9: #{tpu_custom_call.1} parent=5 // pred_check
        _
      $region10: #{tpu_custom_call.1} parent=5 // pred_check_branch
        %160 = sbr.rel (%p157) target = $region12
      $region11: #{tpu_custom_call.1} parent=5 // pred_region
        %s161 = ssub.s32 %s13, 1
        // Predicated region
        $region13: #{tpu_custom_call.1} parent=11 // pred_check
          %p162 = pneg %p100
        $region14: #{tpu_custom_call.1} parent=11 // pred_check_branch
          %164 = sbr.rel (%p162) target = $region16
        $region15: #{tpu_custom_call.1} parent=11 // pred_region
          _
        $region16: #{tpu_custom_call.1} parent=11 // pred_fallthru
          _
        // Predicated region
        $region17: #{tpu_custom_call.1} parent=11 // pred_check
          %p165 = pneg %p121
        $region18: #{tpu_custom_call.1} parent=11 // pred_check_branch
          %167 = sbr.rel (%p165) target = $region20
        $region19: #{tpu_custom_call.1} parent=11 // pred_region
          _
        $region20: #{tpu_custom_call.1} parent=11 // pred_fallthru
          _
      $region12: #{tpu_custom_call.1} parent=5 // pred_fallthru
        _
      %p168 = scmp.lt.s32.totalorder %s13, 4
      // Predicated region
      $region21: #{tpu_custom_call.1} parent=5 // pred_check
        %p169 = pneg %p168
      $region22: #{tpu_custom_call.1} parent=5 // pred_check_branch
        %171 = sbr.rel (%p169) target = $region24
      $region23: #{tpu_custom_call.1} parent=5 // pred_region
        // Predicated region
        $region25: #{tpu_custom_call.1} parent=23 // pred_check
          %p172 = pneg %p47
        $region26: #{tpu_custom_call.1} parent=23 // pred_check_branch
          %174 = sbr.rel (%p172) target = $region28
        $region27: #{tpu_custom_call.1} parent=23 // pred_region
          %s175 = sand.u32 %s37, 1
          %s176 = sand.u32 %s37, 1
          %s177 = smul.addr %s176, 64
          %s178 = scalar_lea.vmem [#allocation3], %s177
          %s179 = smul.u32 16, %s20
          %s180 = smul.addr %s179, 2
          %s181 = sadd.s32 %s21, %s180
          %s182 = smul.addr %s181, 4
          %s183 = scalar_lea.vmem %s0, %s182
          // Predicated region
          $region29: #{tpu_custom_call.1} parent=27 // pred_check
            _
          $region30: #{tpu_custom_call.1} parent=27 // pred_check_branch
            %185 = sbr.rel (0) target = $region32
          $region31: #{tpu_custom_call.1} parent=27 // pred_region
            // Predicated region
            $region33: #{tpu_custom_call.1} parent=31 // pred_check
              _
            $region34: #{tpu_custom_call.1} parent=31 // pred_check_branch
              %187 = sbr.rel target = $region36
            $region35: #{tpu_custom_call.1} parent=31 // pred_region
              // Predicated region
              $region48: #{tpu_custom_call.1} parent=35 // pred_check
                _
              $region49: #{tpu_custom_call.1} parent=35 // pred_check_branch
                %233 = sbr.rel (0) target = $region51
              $region50: #{tpu_custom_call.1} parent=35 // pred_region
                loop: start=0, step=1, limit=1
                $region52: #{tpu_custom_call.1} parent=50 // loop_pre_header
                  _
                $region53: #{tpu_custom_call.1} parent=50 // loop_header
                  %s235 = sphi 0, %s239
                  %p236 = scmp.ge.s32.totalorder %s235, 1
                  %s240 = sphi %s183, %s183
                  %s241 = sphi %s178, %s178
                $region54: #{tpu_custom_call.1} parent=50 // loop_header_branch
                  %238 = sbr.rel (%p236) target = $region58
                $region55: #{tpu_custom_call.1} parent=50 // loop_body
                  _
                $region56: #{tpu_custom_call.1} parent=50 // loop_footer
                  %s239 = sadd.s32 1, %s235
                $region57: #{tpu_custom_call.1} parent=50 // loop_footer_branch
                  %234 = sbr.rel target = $region53
                $region58: #{tpu_custom_call.1} parent=50 // loop_exit
                  _
                %s243 = ssub.s32 16, 1
                loop: start=0, step=1, limit=1
                $region59: #{tpu_custom_call.1} parent=50 // loop_pre_header
                  _
                $region60: #{tpu_custom_call.1} parent=50 // loop_header
                  %s245 = sphi 0, %s249
                  %p246 = scmp.ge.s32.totalorder %s245, 1
                  %s250 = sphi %s183, %s183
                  %s251 = sphi %s178, %s178
                $region61: #{tpu_custom_call.1} parent=50 // loop_header_branch
                  %248 = sbr.rel (%p246) target = $region65
                $region62: #{tpu_custom_call.1} parent=50 // loop_body
                  %v252 = vld [vmem:[%s250] sm:%s243]
                  %253 = vst [vmem:[%s251] sm:%s243] %v252
                  %v254 = vld [vmem:[%s250 + $0x8] sm:%s243]
                  %255 = vst [vmem:[%s251 + $0x4] sm:%s243] %v254
                  %v256 = vld [vmem:[%s250 + $0x10] sm:%s243]
                  %257 = vst [vmem:[%s251 + $0x8] sm:%s243] %v256
                  %v258 = vld [vmem:[%s250 + $0x18] sm:%s243]
                  %259 = vst [vmem:[%s251 + $0xc] sm:%s243] %v258
                  %v260 = vld [vmem:[%s250 + $0x20] sm:%s243]
                  %261 = vst [vmem:[%s251 + $0x10] sm:%s243] %v260
                  %v262 = vld [vmem:[%s250 + $0x28] sm:%s243]
                  %263 = vst [vmem:[%s251 + $0x14] sm:%s243] %v262
                  %v264 = vld [vmem:[%s250 + $0x30] sm:%s243]
                  %265 = vst [vmem:[%s251 + $0x18] sm:%s243] %v264
                  %v266 = vld [vmem:[%s250 + $0x38] sm:%s243]
                  %267 = vst [vmem:[%s251 + $0x1c] sm:%s243] %v266
                  %v268 = vld [vmem:[%s250 + $0x40] sm:%s243]
                  %269 = vst [vmem:[%s251 + $0x20] sm:%s243] %v268
                  %v270 = vld [vmem:[%s250 + $0x48] sm:%s243]
                  %271 = vst [vmem:[%s251 + $0x24] sm:%s243] %v270
                  %v272 = vld [vmem:[%s250 + $0x50] sm:%s243]
                  %273 = vst [vmem:[%s251 + $0x28] sm:%s243] %v272
                  %v274 = vld [vmem:[%s250 + $0x58] sm:%s243]
                  %275 = vst [vmem:[%s251 + $0x2c] sm:%s243] %v274
                  %v276 = vld [vmem:[%s250 + $0x60] sm:%s243]
                  %277 = vst [vmem:[%s251 + $0x30] sm:%s243] %v276
                  %v278 = vld [vmem:[%s250 + $0x68] sm:%s243]
                  %279 = vst [vmem:[%s251 + $0x34] sm:%s243] %v278
                  %v280 = vld [vmem:[%s250 + $0x70] sm:%s243]
                  %281 = vst [vmem:[%s251 + $0x38] sm:%s243] %v280
                  %v282 = vld [vmem:[%s250 + $0x78] sm:%s243]
                  %283 = vst [vmem:[%s251 + $0x3c] sm:%s243] %v282
                $region63: #{tpu_custom_call.1} parent=50 // loop_footer
                  %s249 = sadd.s32 1, %s245
                $region64: #{tpu_custom_call.1} parent=50 // loop_footer_branch
                  %244 = sbr.rel target = $region60
                $region65: #{tpu_custom_call.1} parent=50 // loop_exit
                  _
              $region51: #{tpu_custom_call.1} parent=35 // pred_fallthru
                _
            $region36: #{tpu_custom_call.1} parent=31 // pred_fallthru
              _
            // Predicated region
            $region37: #{tpu_custom_call.1} parent=31 // pred_check
              _
            $region38: #{tpu_custom_call.1} parent=31 // pred_check_branch
              %189 = sbr.rel (0) target = $region40
            $region39: #{tpu_custom_call.1} parent=31 // pred_region
              %s191 = ssub.s32 16, 1
              loop: start=0, step=1, limit=1
              $region41: #{tpu_custom_call.1} parent=39 // loop_pre_header
                _
              $region42: #{tpu_custom_call.1} parent=39 // loop_header
                %s193 = sphi 0, %s197
                %p194 = scmp.ge.s32.totalorder %s193, 1
                %s198 = sphi %s183, %s183
                %s199 = sphi %s178, %s178
              $region43: #{tpu_custom_call.1} parent=39 // loop_header_branch
                %196 = sbr.rel (%p194) target = $region47
              $region44: #{tpu_custom_call.1} parent=39 // loop_body
                %v200 = vld [vmem:[%s198] sm:%s191]
                %201 = vst [vmem:[%s199] sm:%s191] %v200
                %v202 = vld [vmem:[%s198 + $0x8] sm:%s191]
                %203 = vst [vmem:[%s199 + $0x4] sm:%s191] %v202
                %v204 = vld [vmem:[%s198 + $0x10] sm:%s191]
                %205 = vst [vmem:[%s199 + $0x8] sm:%s191] %v204
                %v206 = vld [vmem:[%s198 + $0x18] sm:%s191]
                %207 = vst [vmem:[%s199 + $0xc] sm:%s191] %v206
                %v208 = vld [vmem:[%s198 + $0x20] sm:%s191]
                %209 = vst [vmem:[%s199 + $0x10] sm:%s191] %v208
                %v210 = vld [vmem:[%s198 + $0x28] sm:%s191]
                %211 = vst [vmem:[%s199 + $0x14] sm:%s191] %v210
                %v212 = vld [vmem:[%s198 + $0x30] sm:%s191]
                %213 = vst [vmem:[%s199 + $0x18] sm:%s191] %v212
                %v214 = vld [vmem:[%s198 + $0x38] sm:%s191]
                %215 = vst [vmem:[%s199 + $0x1c] sm:%s191] %v214
                %v216 = vld [vmem:[%s198 + $0x40] sm:%s191]
                %217 = vst [vmem:[%s199 + $0x20] sm:%s191] %v216
                %v218 = vld [vmem:[%s198 + $0x48] sm:%s191]
                %219 = vst [vmem:[%s199 + $0x24] sm:%s191] %v218
                %v220 = vld [vmem:[%s198 + $0x50] sm:%s191]
                %221 = vst [vmem:[%s199 + $0x28] sm:%s191] %v220
                %v222 = vld [vmem:[%s198 + $0x58] sm:%s191]
                %223 = vst [vmem:[%s199 + $0x2c] sm:%s191] %v222
                %v224 = vld [vmem:[%s198 + $0x60] sm:%s191]
                %225 = vst [vmem:[%s199 + $0x30] sm:%s191] %v224
                %v226 = vld [vmem:[%s198 + $0x68] sm:%s191]
                %227 = vst [vmem:[%s199 + $0x34] sm:%s191] %v226
                %v228 = vld [vmem:[%s198 + $0x70] sm:%s191]
                %229 = vst [vmem:[%s199 + $0x38] sm:%s191] %v228
                %v230 = vld [vmem:[%s198 + $0x78] sm:%s191]
                %231 = vst [vmem:[%s199 + $0x3c] sm:%s191] %v230
              $region45: #{tpu_custom_call.1} parent=39 // loop_footer
                %s197 = sadd.s32 1, %s193
              $region46: #{tpu_custom_call.1} parent=39 // loop_footer_branch
                %192 = sbr.rel target = $region42
              $region47: #{tpu_custom_call.1} parent=39 // loop_exit
                _
            $region40: #{tpu_custom_call.1} parent=31 // pred_fallthru
              _
          $region32: #{tpu_custom_call.1} parent=27 // pred_fallthru
            _
          %284 = vnop
        $region28: #{tpu_custom_call.1} parent=23 // pred_fallthru
          _
        // Predicated region
        $region66: #{tpu_custom_call.1} parent=23 // pred_check
          %p285 = pneg %p73
        $region67: #{tpu_custom_call.1} parent=23 // pred_check_branch
          %287 = sbr.rel (%p285) target = $region69
        $region68: #{tpu_custom_call.1} parent=23 // pred_region
          %s288 = smul.u32 16, %s21
          %p289 = scmp.lt.s32.totalorder %s288, 31
          %s290 = scalar_select %p289, %s288, 31
          %s291 = smul.addr %s290, 8
          %s292 = scalar_lea.vmem %s1, %s291
          %s293 = smul.u32 16, %s21
        $region69: #{tpu_custom_call.1} parent=23 // pred_fallthru
          _
      $region24: #{tpu_custom_call.1} parent=5 // pred_fallthru
        _
      %p294 = scmp.le.s32.totalorder 1, %s13
      %p295 = scmp.lt.s32.totalorder %s13, 5
      %p296 = pnand %p294, %p295
      %p297 = pneg %p296
      // Predicated region
      $region70: #{tpu_custom_call.1} parent=5 // pred_check
        _
      $region71: #{tpu_custom_call.1} parent=5 // pred_check_branch
        %299 = sbr.rel (%p296) target = $region73
      $region72: #{tpu_custom_call.1} parent=5 // pred_region
        %s300 = ssub.s32 %s13, 1
        %s301 = sand.u32 %s40, 1
        %s302 = sand.u32 %s40, 1
        %s303 = smul.addr %s302, 64
        %s304 = scalar_lea.vmem [#allocation3], %s303
        // Predicated region
        $region74: #{tpu_custom_call.1} parent=72 // pred_check
          %p305 = pneg %p53
        $region75: #{tpu_custom_call.1} parent=72 // pred_check_branch
          %307 = sbr.rel (%p305) target = $region77
        $region76: #{tpu_custom_call.1} parent=72 // pred_region
          _
        $region77: #{tpu_custom_call.1} parent=72 // pred_fallthru
          _
        %s308 = sand.u32 %s40, 1
        %s309 = sand.u32 %s40, 1
        %s310 = smul.addr %s309, 64
        %s311 = scalar_lea.vmem [#allocation3], %s310
        %p312 = pneg %p53
        %p313 = pneg %p50
        %s314 = smul.u32 16, %s23
        %p315 = scmp.lt.s32.totalorder %s314, 31
        %s316 = scalar_select %p315, %s314, 31
        %s317 = smul.addr %s316, 8
        %s318 = scalar_lea.vmem %s1, %s317
        %p319 = pneg %p79
        %p320 = pneg %p76
        %p321 = pneg %p100
        %p322 = pneg %p97
        %p323 = pneg %p121
        %p324 = pneg %p118
        %p325 = pneg %p147
        %p326 = pneg %p144
        %s327 = sand.u32 %s134, 1
        %s328 = scalar_lea.sflag [#allocation5], %s327
        %s329 = sand.u32 %s134, 1
        %s330 = smul.addr %s329, 128
        %s331 = scalar_lea.vmem [#allocation4], %s330
        %s332 = smul.u32 16, %s22
        %s333 = smul.u32 16, %s23
        %p334 = scmp.lt.s32.totalorder %s333, 31
        %s335 = scalar_select %p334, %s333, 31
        %s336 = smul.addr %s335, 8
        %s337 = scalar_lea.vmem %s1, %s336
        %s338 = smul.u32 16, %s23
        %s339 = smul.u32 16, %s22
        %p341 = scmp.eq.s32.totalorder %s23, 0
        // Predicated region
        $region78: #{tpu_custom_call.1} parent=72 // pred_check
          %p342 = pneg %p341
        $region79: #{tpu_custom_call.1} parent=72 // pred_check_branch
          %344 = sbr.rel (%p342) target = $region81
        $region80: #{tpu_custom_call.1} parent=72 // pred_region
          %345 = vst [vmem:[#allocation2] sm:$0xff] 0.0
          %346 = vst [vmem:[#allocation2 + $0x8] sm:$0xff] 0.0
          %347 = vst [vmem:[#allocation2 + $0x10] sm:$0xff] 0.0
          %348 = vst [vmem:[#allocation2 + $0x18] sm:$0xff] 0.0
          %349 = vst [vmem:[#allocation2 + $0x20] sm:$0xff] 0.0
          %350 = vst [vmem:[#allocation2 + $0x28] sm:$0xff] 0.0
          %351 = vst [vmem:[#allocation2 + $0x30] sm:$0xff] 0.0
          %352 = vst [vmem:[#allocation2 + $0x38] sm:$0xff] 0.0
          %353 = vst [vmem:[#allocation2 + $0x40] sm:$0xff] 0.0
          %354 = vst [vmem:[#allocation2 + $0x48] sm:$0xff] 0.0
          %355 = vst [vmem:[#allocation2 + $0x50] sm:$0xff] 0.0
          %356 = vst [vmem:[#allocation2 + $0x58] sm:$0xff] 0.0
          %357 = vst [vmem:[#allocation2 + $0x60] sm:$0xff] 0.0
          %358 = vst [vmem:[#allocation2 + $0x68] sm:$0xff] 0.0
          %359 = vst [vmem:[#allocation2 + $0x70] sm:$0xff] 0.0
          %360 = vst [vmem:[#allocation2 + $0x78] sm:$0xff] 0.0
        $region81: #{tpu_custom_call.1} parent=72 // pred_fallthru
          _
        %v361 = vld [vmem:[%s337] sm:$0xff]
        %v362 = vld [vmem:[%s337 + $0x8] sm:$0xff]
        %v363 = vld [vmem:[%s337 + $0x10] sm:$0xff]
        %v364 = vld [vmem:[%s337 + $0x18] sm:$0xff]
        %v365 = vld [vmem:[%s337 + $0x20] sm:$0xff]
        %v366 = vld [vmem:[%s337 + $0x28] sm:$0xff]
        %v367 = vld [vmem:[%s337 + $0x30] sm:$0xff]
        %v368 = vld [vmem:[%s337 + $0x38] sm:$0xff]
        %v369 = vld [vmem:[%s337 + $0x40] sm:$0xff]
        %v370 = vld [vmem:[%s337 + $0x48] sm:$0xff]
        %v371 = vld [vmem:[%s337 + $0x50] sm:$0xff]
        %v372 = vld [vmem:[%s337 + $0x58] sm:$0xff]
        %v373 = vld [vmem:[%s337 + $0x60] sm:$0xff]
        %v374 = vld [vmem:[%s337 + $0x68] sm:$0xff]
        %v375 = vld [vmem:[%s337 + $0x70] sm:$0xff]
        %v376 = vld [vmem:[%s337 + $0x78] sm:$0xff]
        %v377 = vlaneseq
        %v378 = vand.u32 %v377, 127
        %vm379 = vcmp.eq.s32.totalorder %v378, 0
        %v380 = vsel %vm379, 0.0, %v361
        %v381 = vsel %vm379, 0.0, %v362
        %v382 = vsel %vm379, 0.0, %v363
        %v383 = vsel %vm379, 0.0, %v364
        %v384 = vsel %vm379, 0.0, %v365
        %v385 = vsel %vm379, 0.0, %v366
        %v386 = vsel %vm379, 0.0, %v367
        %v387 = vsel %vm379, 0.0, %v368
        %v388 = vsel %vm379, 0.0, %v369
        %v389 = vsel %vm379, 0.0, %v370
        %v390 = vsel %vm379, 0.0, %v371
        %v391 = vsel %vm379, 0.0, %v372
        %v392 = vsel %vm379, 0.0, %v373
        %v393 = vsel %vm379, 0.0, %v374
        %v394 = vsel %vm379, 0.0, %v375
        %v395 = vsel %vm379, 0.0, %v376
        %v396 = vmul.f32 %v380, %v380
        %v397 = vmul.f32 %v381, %v381
        %v398 = vmul.f32 %v382, %v382
        %v399 = vmul.f32 %v383, %v383
        %v400 = vmul.f32 %v384, %v384
        %v401 = vmul.f32 %v385, %v385
        %v402 = vmul.f32 %v386, %v386
        %v403 = vmul.f32 %v387, %v387
        %v404 = vmul.f32 %v388, %v388
        %v405 = vmul.f32 %v389, %v389
        %v406 = vmul.f32 %v390, %v390
        %v407 = vmul.f32 %v391, %v391
        %v408 = vmul.f32 %v392, %v392
        %v409 = vmul.f32 %v393, %v393
        %v410 = vmul.f32 %v394, %v394
        %v411 = vmul.f32 %v395, %v395
        %vm412 = vcmask 64512
        %v413 = vsel %vm412, %v396, 0.0
        %414 = vadd.xlane.f32.xlu0 %v413
        %v415 = vpop.xlane.xlu0 %414
        %v416 = vsel %vm412, %v397, 0.0
        %417 = vadd.xlane.f32.xlu0 %v416
        %v418 = vpop.xlane.xlu0 %417
        %v419 = vsel %vm412, %v398, 0.0
        %420 = vadd.xlane.f32.xlu0 %v419
        %v421 = vpop.xlane.xlu0 %420
        %v422 = vsel %vm412, %v399, 0.0
        %423 = vadd.xlane.f32.xlu0 %v422
        %v424 = vpop.xlane.xlu0 %423
        %v425 = vsel %vm412, %v400, 0.0
        %426 = vadd.xlane.f32.xlu0 %v425
        %v427 = vpop.xlane.xlu0 %426
        %v428 = vsel %vm412, %v401, 0.0
        %429 = vadd.xlane.f32.xlu0 %v428
        %v430 = vpop.xlane.xlu0 %429
        %v431 = vsel %vm412, %v402, 0.0
        %432 = vadd.xlane.f32.xlu0 %v431
        %v433 = vpop.xlane.xlu0 %432
        %v434 = vsel %vm412, %v403, 0.0
        %435 = vadd.xlane.f32.xlu0 %v434
        %v436 = vpop.xlane.xlu0 %435
        %v437 = vsel %vm412, %v404, 0.0
        %438 = vadd.xlane.f32.xlu0 %v437
        %v439 = vpop.xlane.xlu0 %438
        %v440 = vsel %vm412, %v405, 0.0
        %441 = vadd.xlane.f32.xlu0 %v440
        %v442 = vpop.xlane.xlu0 %441
        %v443 = vsel %vm412, %v406, 0.0
        %444 = vadd.xlane.f32.xlu0 %v443
        %v445 = vpop.xlane.xlu0 %444
        %v446 = vsel %vm412, %v407, 0.0
        %447 = vadd.xlane.f32.xlu0 %v446
        %v448 = vpop.xlane.xlu0 %447
        %v449 = vsel %vm412, %v408, 0.0
        %450 = vadd.xlane.f32.xlu0 %v449
        %v451 = vpop.xlane.xlu0 %450
        %v452 = vsel %vm412, %v409, 0.0
        %453 = vadd.xlane.f32.xlu0 %v452
        %v454 = vpop.xlane.xlu0 %453
        %v455 = vsel %vm412, %v410, 0.0
        %456 = vadd.xlane.f32.xlu0 %v455
        %v457 = vpop.xlane.xlu0 %456
        %v458 = vsel %vm412, %v411, 0.0
        %459 = vadd.xlane.f32.xlu0 %v458
        %v460 = vpop.xlane.xlu0 %459
        %v461 = vmax.f32 %v415, 1e-06
        %v462 = vmax.f32 %v418, 1e-06
        %v463 = vmax.f32 %v421, 1e-06
        %v464 = vmax.f32 %v424, 1e-06
        %v465 = vmax.f32 %v427, 1e-06
        %v466 = vmax.f32 %v430, 1e-06
        %v467 = vmax.f32 %v433, 1e-06
        %v468 = vmax.f32 %v436, 1e-06
        %v469 = vmax.f32 %v439, 1e-06
        %v470 = vmax.f32 %v442, 1e-06
        %v471 = vmax.f32 %v445, 1e-06
        %v472 = vmax.f32 %v448, 1e-06
        %v473 = vmax.f32 %v451, 1e-06
        %v474 = vmax.f32 %v454, 1e-06
        %v475 = vmax.f32 %v457, 1e-06
        %v476 = vmax.f32 %v460, 1e-06
        %v477 = vrsqrt.pop %v461
        %v478 = vmul.f32 %v461, %v477
        %vm479 = vcmp.eq.f32.partialorder %v461, inf
        %v480 = vsel %vm479, %v461, %v478
        %vm481 = vcmp.eq.f32.partialorder %v461, 0.0
        %v482 = vand.u32 %v461, 2147483648
        %v483 = vsel %vm481, %v482, %v480
        %v484 = vrsqrt.pop %v462
        %v485 = vmul.f32 %v462, %v484
        %vm486 = vcmp.eq.f32.partialorder %v462, inf
        %v487 = vsel %vm486, %v462, %v485
        %vm488 = vcmp.eq.f32.partialorder %v462, 0.0
        %v489 = vand.u32 %v462, 2147483648
        %v490 = vsel %vm488, %v489, %v487
        %v491 = vrsqrt.pop %v463
        %v492 = vmul.f32 %v463, %v491
        %vm493 = vcmp.eq.f32.partialorder %v463, inf
        %v494 = vsel %vm493, %v463, %v492
        %vm495 = vcmp.eq.f32.partialorder %v463, 0.0
        %v496 = vand.u32 %v463, 2147483648
        %v497 = vsel %vm495, %v496, %v494
        %v498 = vrsqrt.pop %v464
        %v499 = vmul.f32 %v464, %v498
        %vm500 = vcmp.eq.f32.partialorder %v464, inf
        %v501 = vsel %vm500, %v464, %v499
        %vm502 = vcmp.eq.f32.partialorder %v464, 0.0
        %v503 = vand.u32 %v464, 2147483648
        %v504 = vsel %vm502, %v503, %v501
        %v505 = vrsqrt.pop %v465
        %v506 = vmul.f32 %v465, %v505
        %vm507 = vcmp.eq.f32.partialorder %v465, inf
        %v508 = vsel %vm507, %v465, %v506
        %vm509 = vcmp.eq.f32.partialorder %v465, 0.0
        %v510 = vand.u32 %v465, 2147483648
        %v511 = vsel %vm509, %v510, %v508
        %v512 = vrsqrt.pop %v466
        %v513 = vmul.f32 %v466, %v512
        %vm514 = vcmp.eq.f32.partialorder %v466, inf
        %v515 = vsel %vm514, %v466, %v513
        %vm516 = vcmp.eq.f32.partialorder %v466, 0.0
        %v517 = vand.u32 %v466, 2147483648
        %v518 = vsel %vm516, %v517, %v515
        %v519 = vrsqrt.pop %v467
        %v520 = vmul.f32 %v467, %v519
        %vm521 = vcmp.eq.f32.partialorder %v467, inf
        %v522 = vsel %vm521, %v467, %v520
        %vm523 = vcmp.eq.f32.partialorder %v467, 0.0
        %v524 = vand.u32 %v467, 2147483648
        %v525 = vsel %vm523, %v524, %v522
        %v526 = vrsqrt.pop %v468
        %v527 = vmul.f32 %v468, %v526
        %vm528 = vcmp.eq.f32.partialorder %v468, inf
        %v529 = vsel %vm528, %v468, %v527
        %vm530 = vcmp.eq.f32.partialorder %v468, 0.0
        %v531 = vand.u32 %v468, 2147483648
        %v532 = vsel %vm530, %v531, %v529
        %v533 = vrsqrt.pop %v469
        %v534 = vmul.f32 %v469, %v533
        %vm535 = vcmp.eq.f32.partialorder %v469, inf
        %v536 = vsel %vm535, %v469, %v534
        %vm537 = vcmp.eq.f32.partialorder %v469, 0.0
        %v538 = vand.u32 %v469, 2147483648
        %v539 = vsel %vm537, %v538, %v536
        %v540 = vrsqrt.pop %v470
        %v541 = vmul.f32 %v470, %v540
        %vm542 = vcmp.eq.f32.partialorder %v470, inf
        %v543 = vsel %vm542, %v470, %v541
        %vm544 = vcmp.eq.f32.partialorder %v470, 0.0
        %v545 = vand.u32 %v470, 2147483648
        %v546 = vsel %vm544, %v545, %v543
        %v547 = vrsqrt.pop %v471
        %v548 = vmul.f32 %v471, %v547
        %vm549 = vcmp.eq.f32.partialorder %v471, inf
        %v550 = vsel %vm549, %v471, %v548
        %vm551 = vcmp.eq.f32.partialorder %v471, 0.0
        %v552 = vand.u32 %v471, 2147483648
        %v553 = vsel %vm551, %v552, %v550
        %v554 = vrsqrt.pop %v472
        %v555 = vmul.f32 %v472, %v554
        %vm556 = vcmp.eq.f32.partialorder %v472, inf
        %v557 = vsel %vm556, %v472, %v555
        %vm558 = vcmp.eq.f32.partialorder %v472, 0.0
        %v559 = vand.u32 %v472, 2147483648
        %v560 = vsel %vm558, %v559, %v557
        %v561 = vrsqrt.pop %v473
        %v562 = vmul.f32 %v473, %v561
        %vm563 = vcmp.eq.f32.partialorder %v473, inf
        %v564 = vsel %vm563, %v473, %v562
        %vm565 = vcmp.eq.f32.partialorder %v473, 0.0
        %v566 = vand.u32 %v473, 2147483648
        %v567 = vsel %vm565, %v566, %v564
        %v568 = vrsqrt.pop %v474
        %v569 = vmul.f32 %v474, %v568
        %vm570 = vcmp.eq.f32.partialorder %v474, inf
        %v571 = vsel %vm570, %v474, %v569
        %vm572 = vcmp.eq.f32.partialorder %v474, 0.0
        %v573 = vand.u32 %v474, 2147483648
        %v574 = vsel %vm572, %v573, %v571
        %v575 = vrsqrt.pop %v475
        %v576 = vmul.f32 %v475, %v575
        %vm577 = vcmp.eq.f32.partialorder %v475, inf
        %v578 = vsel %vm577, %v475, %v576
        %vm579 = vcmp.eq.f32.partialorder %v475, 0.0
        %v580 = vand.u32 %v475, 2147483648
        %v581 = vsel %vm579, %v580, %v578
        %v582 = vrsqrt.pop %v476
        %v583 = vmul.f32 %v476, %v582
        %vm584 = vcmp.eq.f32.partialorder %v476, inf
        %v585 = vsel %vm584, %v476, %v583
        %vm586 = vcmp.eq.f32.partialorder %v476, 0.0
        %v587 = vand.u32 %v476, 2147483648
        %v588 = vsel %vm586, %v587, %v585
        %v589 = vmax.f32 %v361, 1.000001
        %v590 = vmax.f32 %v362, 1.000001
        %v591 = vmax.f32 %v363, 1.000001
        %v592 = vmax.f32 %v364, 1.000001
        %v593 = vmax.f32 %v365, 1.000001
        %v594 = vmax.f32 %v366, 1.000001
        %v595 = vmax.f32 %v367, 1.000001
        %v596 = vmax.f32 %v368, 1.000001
        %v597 = vmax.f32 %v369, 1.000001
        %v598 = vmax.f32 %v370, 1.000001
        %v599 = vmax.f32 %v371, 1.000001
        %v600 = vmax.f32 %v372, 1.000001
        %v601 = vmax.f32 %v373, 1.000001
        %v602 = vmax.f32 %v374, 1.000001
        %v603 = vmax.f32 %v375, 1.000001
        %v604 = vmax.f32 %v376, 1.000001
        %v605 = vmul.f32 %v589, %v589
        %v606 = vmul.f32 %v590, %v590
        %v607 = vmul.f32 %v591, %v591
        %v608 = vmul.f32 %v592, %v592
        %v609 = vmul.f32 %v593, %v593
        %v610 = vmul.f32 %v594, %v594
        %v611 = vmul.f32 %v595, %v595
        %v612 = vmul.f32 %v596, %v596
        %v613 = vmul.f32 %v597, %v597
        %v614 = vmul.f32 %v598, %v598
        %v615 = vmul.f32 %v599, %v599
        %v616 = vmul.f32 %v600, %v600
        %v617 = vmul.f32 %v601, %v601
        %v618 = vmul.f32 %v602, %v602
        %v619 = vmul.f32 %v603, %v603
        %v620 = vmul.f32 %v604, %v604
        %v621 = vsub.f32 %v605, 1.0
        %v622 = vsub.f32 %v606, 1.0
        %v623 = vsub.f32 %v607, 1.0
        %v624 = vsub.f32 %v608, 1.0
        %v625 = vsub.f32 %v609, 1.0
        %v626 = vsub.f32 %v610, 1.0
        %v627 = vsub.f32 %v611, 1.0
        %v628 = vsub.f32 %v612, 1.0
        %v629 = vsub.f32 %v613, 1.0
        %v630 = vsub.f32 %v614, 1.0
        %v631 = vsub.f32 %v615, 1.0
        %v632 = vsub.f32 %v616, 1.0
        %v633 = vsub.f32 %v617, 1.0
        %v634 = vsub.f32 %v618, 1.0
        %v635 = vsub.f32 %v619, 1.0
        %v636 = vsub.f32 %v620, 1.0
        %v637 = vrsqrt.pop %v621
        %v638 = vmul.f32 %v621, %v637
        %vm639 = vcmp.eq.f32.partialorder %v621, inf
        %v640 = vsel %vm639, %v621, %v638
        %vm641 = vcmp.eq.f32.partialorder %v621, 0.0
        %v642 = vand.u32 %v621, 2147483648
        %v643 = vsel %vm641, %v642, %v640
        %v644 = vrsqrt.pop %v622
        %v645 = vmul.f32 %v622, %v644
        %vm646 = vcmp.eq.f32.partialorder %v622, inf
        %v647 = vsel %vm646, %v622, %v645
        %vm648 = vcmp.eq.f32.partialorder %v622, 0.0
        %v649 = vand.u32 %v622, 2147483648
        %v650 = vsel %vm648, %v649, %v647
        %v651 = vrsqrt.pop %v623
        %v652 = vmul.f32 %v623, %v651
        %vm653 = vcmp.eq.f32.partialorder %v623, inf
        %v654 = vsel %vm653, %v623, %v652
        %vm655 = vcmp.eq.f32.partialorder %v623, 0.0
        %v656 = vand.u32 %v623, 2147483648
        %v657 = vsel %vm655, %v656, %v654
        %v658 = vrsqrt.pop %v624
        %v659 = vmul.f32 %v624, %v658
        %vm660 = vcmp.eq.f32.partialorder %v624, inf
        %v661 = vsel %vm660, %v624, %v659
        %vm662 = vcmp.eq.f32.partialorder %v624, 0.0
        %v663 = vand.u32 %v624, 2147483648
        %v664 = vsel %vm662, %v663, %v661
        %v665 = vrsqrt.pop %v625
        %v666 = vmul.f32 %v625, %v665
        %vm667 = vcmp.eq.f32.partialorder %v625, inf
        %v668 = vsel %vm667, %v625, %v666
        %vm669 = vcmp.eq.f32.partialorder %v625, 0.0
        %v670 = vand.u32 %v625, 2147483648
        %v671 = vsel %vm669, %v670, %v668
        %v672 = vrsqrt.pop %v626
        %v673 = vmul.f32 %v626, %v672
        %vm674 = vcmp.eq.f32.partialorder %v626, inf
        %v675 = vsel %vm674, %v626, %v673
        %vm676 = vcmp.eq.f32.partialorder %v626, 0.0
        %v677 = vand.u32 %v626, 2147483648
        %v678 = vsel %vm676, %v677, %v675
        %v679 = vrsqrt.pop %v627
        %v680 = vmul.f32 %v627, %v679
        %vm681 = vcmp.eq.f32.partialorder %v627, inf
        %v682 = vsel %vm681, %v627, %v680
        %vm683 = vcmp.eq.f32.partialorder %v627, 0.0
        %v684 = vand.u32 %v627, 2147483648
        %v685 = vsel %vm683, %v684, %v682
        %v686 = vrsqrt.pop %v628
        %v687 = vmul.f32 %v628, %v686
        %vm688 = vcmp.eq.f32.partialorder %v628, inf
        %v689 = vsel %vm688, %v628, %v687
        %vm690 = vcmp.eq.f32.partialorder %v628, 0.0
        %v691 = vand.u32 %v628, 2147483648
        %v692 = vsel %vm690, %v691, %v689
        %v693 = vrsqrt.pop %v629
        %v694 = vmul.f32 %v629, %v693
        %vm695 = vcmp.eq.f32.partialorder %v629, inf
        %v696 = vsel %vm695, %v629, %v694
        %vm697 = vcmp.eq.f32.partialorder %v629, 0.0
        %v698 = vand.u32 %v629, 2147483648
        %v699 = vsel %vm697, %v698, %v696
        %v700 = vrsqrt.pop %v630
        %v701 = vmul.f32 %v630, %v700
        %vm702 = vcmp.eq.f32.partialorder %v630, inf
        %v703 = vsel %vm702, %v630, %v701
        %vm704 = vcmp.eq.f32.partialorder %v630, 0.0
        %v705 = vand.u32 %v630, 2147483648
        %v706 = vsel %vm704, %v705, %v703
        %v707 = vrsqrt.pop %v631
        %v708 = vmul.f32 %v631, %v707
        %vm709 = vcmp.eq.f32.partialorder %v631, inf
        %v710 = vsel %vm709, %v631, %v708
        %vm711 = vcmp.eq.f32.partialorder %v631, 0.0
        %v712 = vand.u32 %v631, 2147483648
        %v713 = vsel %vm711, %v712, %v710
        %v714 = vrsqrt.pop %v632
        %v715 = vmul.f32 %v632, %v714
        %vm716 = vcmp.eq.f32.partialorder %v632, inf
        %v717 = vsel %vm716, %v632, %v715
        %vm718 = vcmp.eq.f32.partialorder %v632, 0.0
        %v719 = vand.u32 %v632, 2147483648
        %v720 = vsel %vm718, %v719, %v717
        %v721 = vrsqrt.pop %v633
        %v722 = vmul.f32 %v633, %v721
        %vm723 = vcmp.eq.f32.partialorder %v633, inf
        %v724 = vsel %vm723, %v633, %v722
        %vm725 = vcmp.eq.f32.partialorder %v633, 0.0
        %v726 = vand.u32 %v633, 2147483648
        %v727 = vsel %vm725, %v726, %v724
        %v728 = vrsqrt.pop %v634
        %v729 = vmul.f32 %v634, %v728
        %vm730 = vcmp.eq.f32.partialorder %v634, inf
        %v731 = vsel %vm730, %v634, %v729
        %vm732 = vcmp.eq.f32.partialorder %v634, 0.0
        %v733 = vand.u32 %v634, 2147483648
        %v734 = vsel %vm732, %v733, %v731
        %v735 = vrsqrt.pop %v635
        %v736 = vmul.f32 %v635, %v735
        %vm737 = vcmp.eq.f32.partialorder %v635, inf
        %v738 = vsel %vm737, %v635, %v736
        %vm739 = vcmp.eq.f32.partialorder %v635, 0.0
        %v740 = vand.u32 %v635, 2147483648
        %v741 = vsel %vm739, %v740, %v738
        %v742 = vrsqrt.pop %v636
        %v743 = vmul.f32 %v636, %v742
        %vm744 = vcmp.eq.f32.partialorder %v636, inf
        %v745 = vsel %vm744, %v636, %v743
        %vm746 = vcmp.eq.f32.partialorder %v636, 0.0
        %v747 = vand.u32 %v636, 2147483648
        %v748 = vsel %vm746, %v747, %v745
        %v749 = vadd.f32 %v589, %v643
        %v750 = vadd.f32 %v590, %v650
        %v751 = vadd.f32 %v591, %v657
        %v752 = vadd.f32 %v592, %v664
        %v753 = vadd.f32 %v593, %v671
        %v754 = vadd.f32 %v594, %v678
        %v755 = vadd.f32 %v595, %v685
        %v756 = vadd.f32 %v596, %v692
        %v757 = vadd.f32 %v597, %v699
        %v758 = vadd.f32 %v598, %v706
        %v759 = vadd.f32 %v599, %v713
        %v760 = vadd.f32 %v600, %v720
        %v761 = vadd.f32 %v601, %v727
        %v762 = vadd.f32 %v602, %v734
        %v763 = vadd.f32 %v603, %v741
        %v764 = vadd.f32 %v604, %v748
        %v765 = vlog2.pop %v749
        %v766 = vmul.f32 %v765, 0.6931472
        %v767 = vlog2.pop %v750
        %v768 = vmul.f32 %v767, 0.6931472
        %v769 = vlog2.pop %v751
        %v770 = vmul.f32 %v769, 0.6931472
        %v771 = vlog2.pop %v752
        %v772 = vmul.f32 %v771, 0.6931472
        %v773 = vlog2.pop %v753
        %v774 = vmul.f32 %v773, 0.6931472
        %v775 = vlog2.pop %v754
        %v776 = vmul.f32 %v775, 0.6931472
        %v777 = vlog2.pop %v755
        %v778 = vmul.f32 %v777, 0.6931472
        %v779 = vlog2.pop %v756
        %v780 = vmul.f32 %v779, 0.6931472
        %v781 = vlog2.pop %v757
        %v782 = vmul.f32 %v781, 0.6931472
        %v783 = vlog2.pop %v758
        %v784 = vmul.f32 %v783, 0.6931472
        %v785 = vlog2.pop %v759
        %v786 = vmul.f32 %v785, 0.6931472
        %v787 = vlog2.pop %v760
        %v788 = vmul.f32 %v787, 0.6931472
        %v789 = vlog2.pop %v761
        %v790 = vmul.f32 %v789, 0.6931472
        %v791 = vlog2.pop %v762
        %v792 = vmul.f32 %v791, 0.6931472
        %v793 = vlog2.pop %v763
        %v794 = vmul.f32 %v793, 0.6931472
        %v795 = vlog2.pop %v764
        %v796 = vmul.f32 %v795, 0.6931472
        %v797 = vrcp.pop %v483
        %v798 = vmul.f32 %v766, %v797
        %v799 = vrcp.pop %v490
        %v800 = vmul.f32 %v768, %v799
        %v801 = vrcp.pop %v497
        %v802 = vmul.f32 %v770, %v801
        %v803 = vrcp.pop %v504
        %v804 = vmul.f32 %v772, %v803
        %v805 = vrcp.pop %v511
        %v806 = vmul.f32 %v774, %v805
        %v807 = vrcp.pop %v518
        %v808 = vmul.f32 %v776, %v807
        %v809 = vrcp.pop %v525
        %v810 = vmul.f32 %v778, %v809
        %v811 = vrcp.pop %v532
        %v812 = vmul.f32 %v780, %v811
        %v813 = vrcp.pop %v539
        %v814 = vmul.f32 %v782, %v813
        %v815 = vrcp.pop %v546
        %v816 = vmul.f32 %v784, %v815
        %v817 = vrcp.pop %v553
        %v818 = vmul.f32 %v786, %v817
        %v819 = vrcp.pop %v560
        %v820 = vmul.f32 %v788, %v819
        %v821 = vrcp.pop %v567
        %v822 = vmul.f32 %v790, %v821
        %v823 = vrcp.pop %v574
        %v824 = vmul.f32 %v792, %v823
        %v825 = vrcp.pop %v581
        %v826 = vmul.f32 %v794, %v825
        %v827 = vrcp.pop %v588
        %v828 = vmul.f32 %v796, %v827
        %830 = vset.pattern.permute.xlu0 0
        %831 = vperm.xlu0 %830, %v798
        %v832 = vpop.permute.xlu0 %831
        %835 = vset.pattern.permute.xlu0 0
        %836 = vperm.xlu0 %835, %v800
        %v837 = vpop.permute.xlu0 %836
        %840 = vset.pattern.permute.xlu0 0
        %841 = vperm.xlu0 %840, %v802
        %v842 = vpop.permute.xlu0 %841
        %845 = vset.pattern.permute.xlu0 0
        %846 = vperm.xlu0 %845, %v804
        %v847 = vpop.permute.xlu0 %846
        %850 = vset.pattern.permute.xlu0 0
        %851 = vperm.xlu0 %850, %v806
        %v852 = vpop.permute.xlu0 %851
        %855 = vset.pattern.permute.xlu0 0
        %856 = vperm.xlu0 %855, %v808
        %v857 = vpop.permute.xlu0 %856
        %860 = vset.pattern.permute.xlu0 0
        %861 = vperm.xlu0 %860, %v810
        %v862 = vpop.permute.xlu0 %861
        %865 = vset.pattern.permute.xlu0 0
        %866 = vperm.xlu0 %865, %v812
        %v867 = vpop.permute.xlu0 %866
        %870 = vset.pattern.permute.xlu0 0
        %871 = vperm.xlu0 %870, %v814
        %v872 = vpop.permute.xlu0 %871
        %875 = vset.pattern.permute.xlu0 0
        %876 = vperm.xlu0 %875, %v816
        %v877 = vpop.permute.xlu0 %876
        %880 = vset.pattern.permute.xlu0 0
        %881 = vperm.xlu0 %880, %v818
        %v882 = vpop.permute.xlu0 %881
        %885 = vset.pattern.permute.xlu0 0
        %886 = vperm.xlu0 %885, %v820
        %v887 = vpop.permute.xlu0 %886
        %890 = vset.pattern.permute.xlu0 0
        %891 = vperm.xlu0 %890, %v822
        %v892 = vpop.permute.xlu0 %891
        %895 = vset.pattern.permute.xlu0 0
        %896 = vperm.xlu0 %895, %v824
        %v897 = vpop.permute.xlu0 %896
        %900 = vset.pattern.permute.xlu0 0
        %901 = vperm.xlu0 %900, %v826
        %v902 = vpop.permute.xlu0 %901
        %905 = vset.pattern.permute.xlu0 0
        %906 = vperm.xlu0 %905, %v828
        %v907 = vpop.permute.xlu0 %906
        %v909 = vmul.f32 %v832, %v380
        %v910 = vmul.f32 %v837, %v381
        %v911 = vmul.f32 %v842, %v382
        %v912 = vmul.f32 %v847, %v383
        %v913 = vmul.f32 %v852, %v384
        %v914 = vmul.f32 %v857, %v385
        %v915 = vmul.f32 %v862, %v386
        %v916 = vmul.f32 %v867, %v387
        %v917 = vmul.f32 %v872, %v388
        %v918 = vmul.f32 %v877, %v389
        %v919 = vmul.f32 %v882, %v390
        %v920 = vmul.f32 %v887, %v391
        %v921 = vmul.f32 %v892, %v392
        %v922 = vmul.f32 %v897, %v393
        %v923 = vmul.f32 %v902, %v394
        %v924 = vmul.f32 %v907, %v395
        %v925 = vld [vmem:[%s2] sm:$0xff]
        %v926 = vld [vmem:[%s3] sm:$0x1]
        %v928 = vlaneseq
        %v929 = vshrl.u32 %v928, 7
        %v930 = vsub.s32 0, %v929
        %v931 = vrot.slane %v926, %v930
        %v934 = vsel %vm412, %v909, 0
        %v937 = vsel %vm412, %v910, 0
        %v940 = vsel %vm412, %v911, 0
        %v943 = vsel %vm412, %v912, 0
        %v946 = vsel %vm412, %v913, 0
        %v949 = vsel %vm412, %v914, 0
        %v952 = vsel %vm412, %v915, 0
        %v955 = vsel %vm412, %v916, 0
        %v958 = vsel %vm412, %v917, 0
        %v961 = vsel %vm412, %v918, 0
        %v964 = vsel %vm412, %v919, 0
        %v967 = vsel %vm412, %v920, 0
        %v970 = vsel %vm412, %v921, 0
        %v973 = vsel %vm412, %v922, 0
        %v976 = vsel %vm412, %v923, 0
        %v979 = vsel %vm412, %v924, 0
        %981 = vmatprep.subr.mxu0 0.0
        %982 = vmatpush1.msra.mxu0 0.0
        %983 = vmatprep.subr.mxu0 0.0
        %984 = vmatpush1.msra.mxu0 0.0
        %985 = vmatprep.subr.mxu0 0.0
        %986 = vmatpush1.msra.mxu0 0.0
        %987 = vmatprep.subr.mxu0 0.0
        %988 = vmatpush1.msra.mxu0 0.0
        %989 = vmatprep.subr.mxu0 0.0
        %990 = vmatpush1.msra.mxu0 0.0
        %991 = vmatprep.subr.mxu0 0.0
        %992 = vmatpush1.msra.mxu0 0.0
        %993 = vmatprep.subr.mxu0 0.0
        %994 = vmatpush1.msra.mxu0 0.0
        %995 = vmatprep.subr.mxu0 0.0
        %996 = vmatpush1.msra.mxu0 0.0
        %997 = vmatprep.subr.mxu0 0.0
        %998 = vmatpush1.msra.mxu0 0.0
        %999 = vmatprep.subr.mxu0 0.0
        %1000 = vmatpush1.msra.mxu0 0.0
        %1001 = vmatprep.subr.mxu0 0.0
        %1002 = vmatpush1.msra.mxu0 0.0
        %1003 = vmatprep.subr.mxu0 0.0
        %1004 = vmatpush1.msra.mxu0 0.0
        %1005 = vmatprep.subr.mxu0 0.0
        %1006 = vmatpush1.msra.mxu0 0.0
        %1007 = vmatprep.subr.mxu0 0.0
        %1008 = vmatpush1.msra.mxu0 0.0
        %1009 = vmatprep.subr.mxu0 0.0
        %1010 = vmatpush1.msra.mxu0 0.0
        %1011 = vmatprep.subr.mxu0 0.0
        %1012 = vmatpush1.msra.mxu0 %v925
        %1013 = vmatprep.subr.mxu0 0.0
        %1014 = vmatpush2.msra.mxu0 0.0
        %1015 = vmatprep.subr.mxu0 0.0
        %1016 = vmatpush2.msra.mxu0 0.0
        %1017 = vmatprep.subr.mxu0 0.0
        %1018 = vmatpush2.msra.mxu0 0.0
        %1019 = vmatprep.subr.mxu0 0.0
        %1020 = vmatpush2.msra.mxu0 0.0
        %1021 = vmatprep.subr.mxu0 0.0
        %1022 = vmatpush2.msra.mxu0 0.0
        %1023 = vmatprep.subr.mxu0 0.0
        %1024 = vmatpush2.msra.mxu0 0.0
        %1025 = vmatprep.subr.mxu0 0.0
        %1026 = vmatpush2.msra.mxu0 0.0
        %1027 = vmatprep.subr.mxu0 0.0
        %1028 = vmatpush2.msra.mxu0 0.0
        %1029 = vmatprep.subr.mxu0 0.0
        %1030 = vmatpush2.msra.mxu0 0.0
        %1031 = vmatprep.subr.mxu0 0.0
        %1032 = vmatpush2.msra.mxu0 0.0
        %1033 = vmatprep.subr.mxu0 0.0
        %1034 = vmatpush2.msra.mxu0 0.0
        %1035 = vmatprep.subr.mxu0 0.0
        %1036 = vmatpush2.msra.mxu0 0.0
        %1037 = vmatprep.subr.mxu0 0.0
        %1038 = vmatpush2.msra.mxu0 0.0
        %1039 = vmatprep.subr.mxu0 0.0
        %1040 = vmatpush2.msra.mxu0 0.0
        %1041 = vmatprep.subr.mxu0 0.0
        %1042 = vmatpush2.msra.mxu0 0.0
        %1043 = vmatprep.subr.mxu0 0.0
        %1044 = vmatpush2.msra.mxu0 0.0
        %1045 = vmatprep.mubr.f32.mxu0 0.0
        %1046 = vmatmul.mubr.f32.gmra.mxu0 %v934
        %v1047 = vpop.f32.mrf.mxu0
        %v1048 = vadd.f32 %v931, %v1047
        %v1049 = vpop.f32.mrf.mxu0
        %1050 = vmatprep.mubr.f32.mxu0 0.0
        %1051 = vmatmul.mubr.f32.gmra.mxu0 %v937
        %v1052 = vpop.f32.mrf.mxu0
        %v1053 = vadd.f32 %v931, %v1052
        %v1054 = vpop.f32.mrf.mxu0
        %1055 = vmatprep.mubr.f32.mxu0 0.0
        %1056 = vmatmul.mubr.f32.gmra.mxu0 %v940
        %v1057 = vpop.f32.mrf.mxu0
        %v1058 = vadd.f32 %v931, %v1057
        %v1059 = vpop.f32.mrf.mxu0
        %1060 = vmatprep.mubr.f32.mxu0 0.0
        %1061 = vmatmul.mubr.f32.gmra.mxu0 %v943
        %v1062 = vpop.f32.mrf.mxu0
        %v1063 = vadd.f32 %v931, %v1062
        %v1064 = vpop.f32.mrf.mxu0
        %1065 = vmatprep.mubr.f32.mxu0 0.0
        %1066 = vmatmul.mubr.f32.gmra.mxu0 %v946
        %v1067 = vpop.f32.mrf.mxu0
        %v1068 = vadd.f32 %v931, %v1067
        %v1069 = vpop.f32.mrf.mxu0
        %1070 = vmatprep.mubr.f32.mxu0 0.0
        %1071 = vmatmul.mubr.f32.gmra.mxu0 %v949
        %v1072 = vpop.f32.mrf.mxu0
        %v1073 = vadd.f32 %v931, %v1072
        %v1074 = vpop.f32.mrf.mxu0
        %1075 = vmatprep.mubr.f32.mxu0 0.0
        %1076 = vmatmul.mubr.f32.gmra.mxu0 %v952
        %v1077 = vpop.f32.mrf.mxu0
        %v1078 = vadd.f32 %v931, %v1077
        %v1079 = vpop.f32.mrf.mxu0
        %1080 = vmatprep.mubr.f32.mxu0 0.0
        %1081 = vmatmul.mubr.f32.gmra.mxu0 %v955
        %v1082 = vpop.f32.mrf.mxu0
        %v1083 = vadd.f32 %v931, %v1082
        %v1084 = vpop.f32.mrf.mxu0
        %1085 = vmatprep.mubr.f32.mxu0 0.0
        %1086 = vmatmul.mubr.f32.gmra.mxu0 %v958
        %v1087 = vpop.f32.mrf.mxu0
        %v1088 = vadd.f32 %v931, %v1087
        %v1089 = vpop.f32.mrf.mxu0
        %1090 = vmatprep.mubr.f32.mxu0 0.0
        %1091 = vmatmul.mubr.f32.gmra.mxu0 %v961
        %v1092 = vpop.f32.mrf.mxu0
        %v1093 = vadd.f32 %v931, %v1092
        %v1094 = vpop.f32.mrf.mxu0
        %1095 = vmatprep.mubr.f32.mxu0 0.0
        %1096 = vmatmul.mubr.f32.gmra.mxu0 %v964
        %v1097 = vpop.f32.mrf.mxu0
        %v1098 = vadd.f32 %v931, %v1097
        %v1099 = vpop.f32.mrf.mxu0
        %1100 = vmatprep.mubr.f32.mxu0 0.0
        %1101 = vmatmul.mubr.f32.gmra.mxu0 %v967
        %v1102 = vpop.f32.mrf.mxu0
        %v1103 = vadd.f32 %v931, %v1102
        %v1104 = vpop.f32.mrf.mxu0
        %1105 = vmatprep.mubr.f32.mxu0 0.0
        %1106 = vmatmul.mubr.f32.gmra.mxu0 %v970
        %v1107 = vpop.f32.mrf.mxu0
        %v1108 = vadd.f32 %v931, %v1107
        %v1109 = vpop.f32.mrf.mxu0
        %1110 = vmatprep.mubr.f32.mxu0 0.0
        %1111 = vmatmul.mubr.f32.gmra.mxu0 %v973
        %v1112 = vpop.f32.mrf.mxu0
        %v1113 = vadd.f32 %v931, %v1112
        %v1114 = vpop.f32.mrf.mxu0
        %1115 = vmatprep.mubr.f32.mxu0 0.0
        %1116 = vmatmul.mubr.f32.gmra.mxu0 %v976
        %v1117 = vpop.f32.mrf.mxu0
        %v1118 = vadd.f32 %v931, %v1117
        %v1119 = vpop.f32.mrf.mxu0
        %1120 = vmatprep.mubr.f32.mxu0 0.0
        %1121 = vmatmul.mubr.f32.gmra.mxu0 %v979
        %v1122 = vpop.f32.mrf.mxu0
        %v1123 = vadd.f32 %v931, %v1122
        %v1124 = vpop.f32.mrf.mxu0
        %1125 = vdwg.mxu0
        %v1126 = vsel %vm379, 0.0, %v1048
        %v1127 = vsel %vm379, 0.0, %v1053
        %v1128 = vsel %vm379, 0.0, %v1058
        %v1129 = vsel %vm379, 0.0, %v1063
        %v1130 = vsel %vm379, 0.0, %v1068
        %v1131 = vsel %vm379, 0.0, %v1073
        %v1132 = vsel %vm379, 0.0, %v1078
        %v1133 = vsel %vm379, 0.0, %v1083
        %v1134 = vsel %vm379, 0.0, %v1088
        %v1135 = vsel %vm379, 0.0, %v1093
        %v1136 = vsel %vm379, 0.0, %v1098
        %v1137 = vsel %vm379, 0.0, %v1103
        %v1138 = vsel %vm379, 0.0, %v1108
        %v1139 = vsel %vm379, 0.0, %v1113
        %v1140 = vsel %vm379, 0.0, %v1118
        %v1141 = vsel %vm379, 0.0, %v1123
        %v1142 = vld [vmem:[#allocation2] sm:$0xff]
        %v1143 = vld [vmem:[#allocation2 + $0x8] sm:$0xff]
        %v1144 = vld [vmem:[#allocation2 + $0x10] sm:$0xff]
        %v1145 = vld [vmem:[#allocation2 + $0x18] sm:$0xff]
        %v1146 = vld [vmem:[#allocation2 + $0x20] sm:$0xff]
        %v1147 = vld [vmem:[#allocation2 + $0x28] sm:$0xff]
        %v1148 = vld [vmem:[#allocation2 + $0x30] sm:$0xff]
        %v1149 = vld [vmem:[#allocation2 + $0x38] sm:$0xff]
        %v1150 = vld [vmem:[#allocation2 + $0x40] sm:$0xff]
        %v1151 = vld [vmem:[#allocation2 + $0x48] sm:$0xff]
        %v1152 = vld [vmem:[#allocation2 + $0x50] sm:$0xff]
        %v1153 = vld [vmem:[#allocation2 + $0x58] sm:$0xff]
        %v1154 = vld [vmem:[#allocation2 + $0x60] sm:$0xff]
        %v1155 = vld [vmem:[#allocation2 + $0x68] sm:$0xff]
        %v1156 = vld [vmem:[#allocation2 + $0x70] sm:$0xff]
        %v1157 = vld [vmem:[#allocation2 + $0x78] sm:$0xff]
        %v1158 = vld [vmem:[%s304] sm:$0xf]
        %v1159 = vld [vmem:[%s304 + $0x4] sm:$0xf]
        %v1160 = vld [vmem:[%s304 + $0x8] sm:$0xf]
        %v1161 = vld [vmem:[%s304 + $0xc] sm:$0xf]
        %v1162 = vld [vmem:[%s304 + $0x10] sm:$0xf]
        %v1163 = vld [vmem:[%s304 + $0x14] sm:$0xf]
        %v1164 = vld [vmem:[%s304 + $0x18] sm:$0xf]
        %v1165 = vld [vmem:[%s304 + $0x1c] sm:$0xf]
        %v1166 = vld [vmem:[%s304 + $0x20] sm:$0xf]
        %v1167 = vld [vmem:[%s304 + $0x24] sm:$0xf]
        %v1168 = vld [vmem:[%s304 + $0x28] sm:$0xf]
        %v1169 = vld [vmem:[%s304 + $0x2c] sm:$0xf]
        %v1170 = vld [vmem:[%s304 + $0x30] sm:$0xf]
        %v1171 = vld [vmem:[%s304 + $0x34] sm:$0xf]
        %v1172 = vld [vmem:[%s304 + $0x38] sm:$0xf]
        %v1173 = vld [vmem:[%s304 + $0x3c] sm:$0xf]
        %v1174 = vpack.c.bf16 %v1127, %v1126
        %v1175 = vpack.c.bf16 %v1129, %v1128
        %v1176 = vpack.c.bf16 %v1131, %v1130
        %v1177 = vpack.c.bf16 %v1133, %v1132
        %v1178 = vpack.c.bf16 %v1135, %v1134
        %v1179 = vpack.c.bf16 %v1137, %v1136
        %v1180 = vpack.c.bf16 %v1139, %v1138
        %v1181 = vpack.c.bf16 %v1141, %v1140
        %v1198 = vunpack.c.l.b16 %v1158
        %v1199 = vunpack.c.l.b16 %v1159
        %v1200 = vunpack.c.l.b16 %v1160
        %v1201 = vunpack.c.l.b16 %v1161
        %v1202 = vunpack.c.l.b16 %v1162
        %v1203 = vunpack.c.l.b16 %v1163
        %v1204 = vunpack.c.l.b16 %v1164
        %v1205 = vunpack.c.l.b16 %v1165
        %v1206 = vunpack.c.l.b16 %v1166
        %v1207 = vunpack.c.l.b16 %v1167
        %v1208 = vunpack.c.l.b16 %v1168
        %v1209 = vunpack.c.l.b16 %v1169
        %v1210 = vunpack.c.l.b16 %v1170
        %v1211 = vunpack.c.l.b16 %v1171
        %v1212 = vunpack.c.l.b16 %v1172
        %v1213 = vunpack.c.l.b16 %v1173
        %v1214 = vpack.c.b16 %v1199, %v1198
        %v1215 = vpack.c.b16 %v1201, %v1200
        %v1216 = vpack.c.b16 %v1203, %v1202
        %v1217 = vpack.c.b16 %v1205, %v1204
        %v1218 = vpack.c.b16 %v1207, %v1206
        %v1219 = vpack.c.b16 %v1209, %v1208
        %v1220 = vpack.c.b16 %v1211, %v1210
        %v1221 = vpack.c.b16 %v1213, %v1212
        %1230 = vmatprep.subr.bf16.mxu0 0
        %1231 = vmatpush1.bf16.msra.mxu0 %v1181
        %1232 = vmatprep.subr.bf16.mxu0 0
        %1233 = vmatpush1.bf16.msra.mxu0 %v1180
        %1234 = vmatprep.subr.bf16.mxu0 0
        %1235 = vmatpush1.bf16.msra.mxu0 %v1179
        %1236 = vmatprep.subr.bf16.mxu0 0
        %1237 = vmatpush1.bf16.msra.mxu0 %v1178
        %1238 = vmatprep.subr.bf16.mxu0 0
        %1239 = vmatpush1.bf16.msra.mxu0 %v1177
        %1240 = vmatprep.subr.bf16.mxu0 0
        %1241 = vmatpush1.bf16.msra.mxu0 %v1176
        %1242 = vmatprep.subr.bf16.mxu0 0
        %1243 = vmatpush1.bf16.msra.mxu0 %v1175
        %1244 = vmatprep.subr.bf16.mxu0 0
        %1245 = vmatpush1.bf16.msra.mxu0 %v1174
        %1246 = vmatprep.subr.bf16.mxu0 0
        %1247 = vmatpush2.bf16.msra.mxu0 0
        %1248 = vmatprep.subr.bf16.mxu0 0
        %1249 = vmatpush2.bf16.msra.mxu0 0
        %1250 = vmatprep.subr.bf16.mxu0 0
        %1251 = vmatpush2.bf16.msra.mxu0 0
        %1252 = vmatprep.subr.bf16.mxu0 0
        %1253 = vmatpush2.bf16.msra.mxu0 0
        %1254 = vmatprep.subr.bf16.mxu0 0
        %1255 = vmatpush2.bf16.msra.mxu0 0
        %1256 = vmatprep.subr.bf16.mxu0 0
        %1257 = vmatpush2.bf16.msra.mxu0 0
        %1258 = vmatprep.subr.bf16.mxu0 0
        %1259 = vmatpush2.bf16.msra.mxu0 0
        %1260 = vmatprep.subr.bf16.mxu0 0
        %1261 = vmatpush2.bf16.msra.mxu0 0
        %1262 = vmatprep.mubr.bf16.mxu0 0
        %1263 = vmatmul.mubr.bf16.gmra.mxu0 %v1214
        %v1264 = vpop.f32.mrf.mxu0
        %v1265 = vadd.f32 0.0, %v1264
        %v1266 = vpop.f32.mrf.mxu0
        %v1267 = vpop.f32.mrf.mxu0
        %v1268 = vadd.f32 0.0, %v1267
        %v1269 = vpop.f32.mrf.mxu0
        %1270 = vmatprep.mubr.bf16.mxu0 0
        %1271 = vmatmul.mubr.bf16.gmra.mxu0 %v1215
        %v1272 = vpop.f32.mrf.mxu0
        %v1273 = vadd.f32 0.0, %v1272
        %v1274 = vpop.f32.mrf.mxu0
        %v1275 = vpop.f32.mrf.mxu0
        %v1276 = vadd.f32 0.0, %v1275
        %v1277 = vpop.f32.mrf.mxu0
        %1278 = vmatprep.mubr.bf16.mxu0 0
        %1279 = vmatmul.mubr.bf16.gmra.mxu0 %v1216
        %v1280 = vpop.f32.mrf.mxu0
        %v1281 = vadd.f32 0.0, %v1280
        %v1282 = vpop.f32.mrf.mxu0
        %v1283 = vpop.f32.mrf.mxu0
        %v1284 = vadd.f32 0.0, %v1283
        %v1285 = vpop.f32.mrf.mxu0
        %1286 = vmatprep.mubr.bf16.mxu0 0
        %1287 = vmatmul.mubr.bf16.gmra.mxu0 %v1217
        %v1288 = vpop.f32.mrf.mxu0
        %v1289 = vadd.f32 0.0, %v1288
        %v1290 = vpop.f32.mrf.mxu0
        %v1291 = vpop.f32.mrf.mxu0
        %v1292 = vadd.f32 0.0, %v1291
        %v1293 = vpop.f32.mrf.mxu0
        %1294 = vmatprep.mubr.bf16.mxu0 0
        %1295 = vmatmul.mubr.bf16.gmra.mxu0 %v1218
        %v1296 = vpop.f32.mrf.mxu0
        %v1297 = vadd.f32 0.0, %v1296
        %v1298 = vpop.f32.mrf.mxu0
        %v1299 = vpop.f32.mrf.mxu0
        %v1300 = vadd.f32 0.0, %v1299
        %v1301 = vpop.f32.mrf.mxu0
        %1302 = vmatprep.mubr.bf16.mxu0 0
        %1303 = vmatmul.mubr.bf16.gmra.mxu0 %v1219
        %v1304 = vpop.f32.mrf.mxu0
        %v1305 = vadd.f32 0.0, %v1304
        %v1306 = vpop.f32.mrf.mxu0
        %v1307 = vpop.f32.mrf.mxu0
        %v1308 = vadd.f32 0.0, %v1307
        %v1309 = vpop.f32.mrf.mxu0
        %1310 = vmatprep.mubr.bf16.mxu0 0
        %1311 = vmatmul.mubr.bf16.gmra.mxu0 %v1220
        %v1312 = vpop.f32.mrf.mxu0
        %v1313 = vadd.f32 0.0, %v1312
        %v1314 = vpop.f32.mrf.mxu0
        %v1315 = vpop.f32.mrf.mxu0
        %v1316 = vadd.f32 0.0, %v1315
        %v1317 = vpop.f32.mrf.mxu0
        %1318 = vmatprep.mubr.bf16.mxu0 0
        %1319 = vmatmul.mubr.bf16.gmra.mxu0 %v1221
        %v1320 = vpop.f32.mrf.mxu0
        %v1321 = vadd.f32 0.0, %v1320
        %v1322 = vpop.f32.mrf.mxu0
        %v1323 = vpop.f32.mrf.mxu0
        %v1324 = vadd.f32 0.0, %v1323
        %v1325 = vpop.f32.mrf.mxu0
        %1326 = vdwg.mxu0
        %v1327 = vadd.f32 %v1142, %v1265
        %v1328 = vadd.f32 %v1143, %v1268
        %v1329 = vadd.f32 %v1144, %v1273
        %v1330 = vadd.f32 %v1145, %v1276
        %v1331 = vadd.f32 %v1146, %v1281
        %v1332 = vadd.f32 %v1147, %v1284
        %v1333 = vadd.f32 %v1148, %v1289
        %v1334 = vadd.f32 %v1149, %v1292
        %v1335 = vadd.f32 %v1150, %v1297
        %v1336 = vadd.f32 %v1151, %v1300
        %v1337 = vadd.f32 %v1152, %v1305
        %v1338 = vadd.f32 %v1153, %v1308
        %v1339 = vadd.f32 %v1154, %v1313
        %v1340 = vadd.f32 %v1155, %v1316
        %v1341 = vadd.f32 %v1156, %v1321
        %v1342 = vadd.f32 %v1157, %v1324
        %1343 = vst [vmem:[#allocation2] sm:$0xff] %v1327
        %1344 = vst [vmem:[#allocation2 + $0x8] sm:$0xff] %v1328
        %1345 = vst [vmem:[#allocation2 + $0x10] sm:$0xff] %v1329
        %1346 = vst [vmem:[#allocation2 + $0x18] sm:$0xff] %v1330
        %1347 = vst [vmem:[#allocation2 + $0x20] sm:$0xff] %v1331
        %1348 = vst [vmem:[#allocation2 + $0x28] sm:$0xff] %v1332
        %1349 = vst [vmem:[#allocation2 + $0x30] sm:$0xff] %v1333
        %1350 = vst [vmem:[#allocation2 + $0x38] sm:$0xff] %v1334
        %1351 = vst [vmem:[#allocation2 + $0x40] sm:$0xff] %v1335
        %1352 = vst [vmem:[#allocation2 + $0x48] sm:$0xff] %v1336
        %1353 = vst [vmem:[#allocation2 + $0x50] sm:$0xff] %v1337
        %1354 = vst [vmem:[#allocation2 + $0x58] sm:$0xff] %v1338
        %1355 = vst [vmem:[#allocation2 + $0x60] sm:$0xff] %v1339
        %1356 = vst [vmem:[#allocation2 + $0x68] sm:$0xff] %v1340
        %1357 = vst [vmem:[#allocation2 + $0x70] sm:$0xff] %v1341
        %1358 = vst [vmem:[#allocation2 + $0x78] sm:$0xff] %v1342
        %p1359 = scmp.eq.s32.totalorder %s23, 1
        // Predicated region
        $region82: #{tpu_custom_call.1} parent=72 // pred_check
          %p1360 = pneg %p1359
        $region83: #{tpu_custom_call.1} parent=72 // pred_check_branch
          %1362 = sbr.rel (%p1360) target = $region85
        $region84: #{tpu_custom_call.1} parent=72 // pred_region
          %v1363 = vld [vmem:[#allocation2] sm:$0xff]
          %v1364 = vld [vmem:[#allocation2 + $0x8] sm:$0xff]
          %v1365 = vld [vmem:[#allocation2 + $0x10] sm:$0xff]
          %v1366 = vld [vmem:[#allocation2 + $0x18] sm:$0xff]
          %v1367 = vld [vmem:[#allocation2 + $0x20] sm:$0xff]
          %v1368 = vld [vmem:[#allocation2 + $0x28] sm:$0xff]
          %v1369 = vld [vmem:[#allocation2 + $0x30] sm:$0xff]
          %v1370 = vld [vmem:[#allocation2 + $0x38] sm:$0xff]
          %v1371 = vld [vmem:[#allocation2 + $0x40] sm:$0xff]
          %v1372 = vld [vmem:[#allocation2 + $0x48] sm:$0xff]
          %v1373 = vld [vmem:[#allocation2 + $0x50] sm:$0xff]
          %v1374 = vld [vmem:[#allocation2 + $0x58] sm:$0xff]
          %v1375 = vld [vmem:[#allocation2 + $0x60] sm:$0xff]
          %v1376 = vld [vmem:[#allocation2 + $0x68] sm:$0xff]
          %v1377 = vld [vmem:[#allocation2 + $0x70] sm:$0xff]
          %v1378 = vld [vmem:[#allocation2 + $0x78] sm:$0xff]
          %v1379 = vmax.f32 %v1363, 0.0
          %v1380 = vmax.f32 %v1364, 0.0
          %v1381 = vmax.f32 %v1365, 0.0
          %v1382 = vmax.f32 %v1366, 0.0
          %v1383 = vmax.f32 %v1367, 0.0
          %v1384 = vmax.f32 %v1368, 0.0
          %v1385 = vmax.f32 %v1369, 0.0
          %v1386 = vmax.f32 %v1370, 0.0
          %v1387 = vmax.f32 %v1371, 0.0
          %v1388 = vmax.f32 %v1372, 0.0
          %v1389 = vmax.f32 %v1373, 0.0
          %v1390 = vmax.f32 %v1374, 0.0
          %v1391 = vmax.f32 %v1375, 0.0
          %v1392 = vmax.f32 %v1376, 0.0
          %v1393 = vmax.f32 %v1377, 0.0
          %v1394 = vmax.f32 %v1378, 0.0
          %v1395 = vsel %vm379, 0.0, %v1379
          %v1396 = vsel %vm379, 0.0, %v1380
          %v1397 = vsel %vm379, 0.0, %v1381
          %v1398 = vsel %vm379, 0.0, %v1382
          %v1399 = vsel %vm379, 0.0, %v1383
          %v1400 = vsel %vm379, 0.0, %v1384
          %v1401 = vsel %vm379, 0.0, %v1385
          %v1402 = vsel %vm379, 0.0, %v1386
          %v1403 = vsel %vm379, 0.0, %v1387
          %v1404 = vsel %vm379, 0.0, %v1388
          %v1405 = vsel %vm379, 0.0, %v1389
          %v1406 = vsel %vm379, 0.0, %v1390
          %v1407 = vsel %vm379, 0.0, %v1391
          %v1408 = vsel %vm379, 0.0, %v1392
          %v1409 = vsel %vm379, 0.0, %v1393
          %v1410 = vsel %vm379, 0.0, %v1394
          %v1411 = vmul.f32 %v1395, %v1395
          %v1412 = vmul.f32 %v1396, %v1396
          %v1413 = vmul.f32 %v1397, %v1397
          %v1414 = vmul.f32 %v1398, %v1398
          %v1415 = vmul.f32 %v1399, %v1399
          %v1416 = vmul.f32 %v1400, %v1400
          %v1417 = vmul.f32 %v1401, %v1401
          %v1418 = vmul.f32 %v1402, %v1402
          %v1419 = vmul.f32 %v1403, %v1403
          %v1420 = vmul.f32 %v1404, %v1404
          %v1421 = vmul.f32 %v1405, %v1405
          %v1422 = vmul.f32 %v1406, %v1406
          %v1423 = vmul.f32 %v1407, %v1407
          %v1424 = vmul.f32 %v1408, %v1408
          %v1425 = vmul.f32 %v1409, %v1409
          %v1426 = vmul.f32 %v1410, %v1410
          %1427 = vadd.xlane.f32.xlu0 %v1411
          %v1428 = vpop.xlane.xlu0 %1427
          %1429 = vadd.xlane.f32.xlu0 %v1412
          %v1430 = vpop.xlane.xlu0 %1429
          %1431 = vadd.xlane.f32.xlu0 %v1413
          %v1432 = vpop.xlane.xlu0 %1431
          %1433 = vadd.xlane.f32.xlu0 %v1414
          %v1434 = vpop.xlane.xlu0 %1433
          %1435 = vadd.xlane.f32.xlu0 %v1415
          %v1436 = vpop.xlane.xlu0 %1435
          %1437 = vadd.xlane.f32.xlu0 %v1416
          %v1438 = vpop.xlane.xlu0 %1437
          %1439 = vadd.xlane.f32.xlu0 %v1417
          %v1440 = vpop.xlane.xlu0 %1439
          %1441 = vadd.xlane.f32.xlu0 %v1418
          %v1442 = vpop.xlane.xlu0 %1441
          %1443 = vadd.xlane.f32.xlu0 %v1419
          %v1444 = vpop.xlane.xlu0 %1443
          %1445 = vadd.xlane.f32.xlu0 %v1420
          %v1446 = vpop.xlane.xlu0 %1445
          %1447 = vadd.xlane.f32.xlu0 %v1421
          %v1448 = vpop.xlane.xlu0 %1447
          %1449 = vadd.xlane.f32.xlu0 %v1422
          %v1450 = vpop.xlane.xlu0 %1449
          %1451 = vadd.xlane.f32.xlu0 %v1423
          %v1452 = vpop.xlane.xlu0 %1451
          %1453 = vadd.xlane.f32.xlu0 %v1424
          %v1454 = vpop.xlane.xlu0 %1453
          %1455 = vadd.xlane.f32.xlu0 %v1425
          %v1456 = vpop.xlane.xlu0 %1455
          %1457 = vadd.xlane.f32.xlu0 %v1426
          %v1458 = vpop.xlane.xlu0 %1457
          %v1459 = vmax.f32 %v1428, 1e-06
          %v1460 = vmax.f32 %v1430, 1e-06
          %v1461 = vmax.f32 %v1432, 1e-06
          %v1462 = vmax.f32 %v1434, 1e-06
          %v1463 = vmax.f32 %v1436, 1e-06
          %v1464 = vmax.f32 %v1438, 1e-06
          %v1465 = vmax.f32 %v1440, 1e-06
          %v1466 = vmax.f32 %v1442, 1e-06
          %v1467 = vmax.f32 %v1444, 1e-06
          %v1468 = vmax.f32 %v1446, 1e-06
          %v1469 = vmax.f32 %v1448, 1e-06
          %v1470 = vmax.f32 %v1450, 1e-06
          %v1471 = vmax.f32 %v1452, 1e-06
          %v1472 = vmax.f32 %v1454, 1e-06
          %v1473 = vmax.f32 %v1456, 1e-06
          %v1474 = vmax.f32 %v1458, 1e-06
          %v1475 = vrsqrt.pop %v1459
          %v1476 = vmul.f32 %v1459, %v1475
          %vm1477 = vcmp.eq.f32.partialorder %v1459, inf
          %v1478 = vsel %vm1477, %v1459, %v1476
          %vm1479 = vcmp.eq.f32.partialorder %v1459, 0.0
          %v1480 = vand.u32 %v1459, 2147483648
          %v1481 = vsel %vm1479, %v1480, %v1478
          %v1482 = vrsqrt.pop %v1460
          %v1483 = vmul.f32 %v1460, %v1482
          %vm1484 = vcmp.eq.f32.partialorder %v1460, inf
          %v1485 = vsel %vm1484, %v1460, %v1483
          %vm1486 = vcmp.eq.f32.partialorder %v1460, 0.0
          %v1487 = vand.u32 %v1460, 2147483648
          %v1488 = vsel %vm1486, %v1487, %v1485
          %v1489 = vrsqrt.pop %v1461
          %v1490 = vmul.f32 %v1461, %v1489
          %vm1491 = vcmp.eq.f32.partialorder %v1461, inf
          %v1492 = vsel %vm1491, %v1461, %v1490
          %vm1493 = vcmp.eq.f32.partialorder %v1461, 0.0
          %v1494 = vand.u32 %v1461, 2147483648
          %v1495 = vsel %vm1493, %v1494, %v1492
          %v1496 = vrsqrt.pop %v1462
          %v1497 = vmul.f32 %v1462, %v1496
          %vm1498 = vcmp.eq.f32.partialorder %v1462, inf
          %v1499 = vsel %vm1498, %v1462, %v1497
          %vm1500 = vcmp.eq.f32.partialorder %v1462, 0.0
          %v1501 = vand.u32 %v1462, 2147483648
          %v1502 = vsel %vm1500, %v1501, %v1499
          %v1503 = vrsqrt.pop %v1463
          %v1504 = vmul.f32 %v1463, %v1503
          %vm1505 = vcmp.eq.f32.partialorder %v1463, inf
          %v1506 = vsel %vm1505, %v1463, %v1504
          %vm1507 = vcmp.eq.f32.partialorder %v1463, 0.0
          %v1508 = vand.u32 %v1463, 2147483648
          %v1509 = vsel %vm1507, %v1508, %v1506
          %v1510 = vrsqrt.pop %v1464
          %v1511 = vmul.f32 %v1464, %v1510
          %vm1512 = vcmp.eq.f32.partialorder %v1464, inf
          %v1513 = vsel %vm1512, %v1464, %v1511
          %vm1514 = vcmp.eq.f32.partialorder %v1464, 0.0
          %v1515 = vand.u32 %v1464, 2147483648
          %v1516 = vsel %vm1514, %v1515, %v1513
          %v1517 = vrsqrt.pop %v1465
          %v1518 = vmul.f32 %v1465, %v1517
          %vm1519 = vcmp.eq.f32.partialorder %v1465, inf
          %v1520 = vsel %vm1519, %v1465, %v1518
          %vm1521 = vcmp.eq.f32.partialorder %v1465, 0.0
          %v1522 = vand.u32 %v1465, 2147483648
          %v1523 = vsel %vm1521, %v1522, %v1520
          %v1524 = vrsqrt.pop %v1466
          %v1525 = vmul.f32 %v1466, %v1524
          %vm1526 = vcmp.eq.f32.partialorder %v1466, inf
          %v1527 = vsel %vm1526, %v1466, %v1525
          %vm1528 = vcmp.eq.f32.partialorder %v1466, 0.0
          %v1529 = vand.u32 %v1466, 2147483648
          %v1530 = vsel %vm1528, %v1529, %v1527
          %v1531 = vrsqrt.pop %v1467
          %v1532 = vmul.f32 %v1467, %v1531
          %vm1533 = vcmp.eq.f32.partialorder %v1467, inf
          %v1534 = vsel %vm1533, %v1467, %v1532
          %vm1535 = vcmp.eq.f32.partialorder %v1467, 0.0
          %v1536 = vand.u32 %v1467, 2147483648
          %v1537 = vsel %vm1535, %v1536, %v1534
          %v1538 = vrsqrt.pop %v1468
          %v1539 = vmul.f32 %v1468, %v1538
          %vm1540 = vcmp.eq.f32.partialorder %v1468, inf
          %v1541 = vsel %vm1540, %v1468, %v1539
          %vm1542 = vcmp.eq.f32.partialorder %v1468, 0.0
          %v1543 = vand.u32 %v1468, 2147483648
          %v1544 = vsel %vm1542, %v1543, %v1541
          %v1545 = vrsqrt.pop %v1469
          %v1546 = vmul.f32 %v1469, %v1545
          %vm1547 = vcmp.eq.f32.partialorder %v1469, inf
          %v1548 = vsel %vm1547, %v1469, %v1546
          %vm1549 = vcmp.eq.f32.partialorder %v1469, 0.0
          %v1550 = vand.u32 %v1469, 2147483648
          %v1551 = vsel %vm1549, %v1550, %v1548
          %v1552 = vrsqrt.pop %v1470
          %v1553 = vmul.f32 %v1470, %v1552
          %vm1554 = vcmp.eq.f32.partialorder %v1470, inf
          %v1555 = vsel %vm1554, %v1470, %v1553
          %vm1556 = vcmp.eq.f32.partialorder %v1470, 0.0
          %v1557 = vand.u32 %v1470, 2147483648
          %v1558 = vsel %vm1556, %v1557, %v1555
          %v1559 = vrsqrt.pop %v1471
          %v1560 = vmul.f32 %v1471, %v1559
          %vm1561 = vcmp.eq.f32.partialorder %v1471, inf
          %v1562 = vsel %vm1561, %v1471, %v1560
          %vm1563 = vcmp.eq.f32.partialorder %v1471, 0.0
          %v1564 = vand.u32 %v1471, 2147483648
          %v1565 = vsel %vm1563, %v1564, %v1562
          %v1566 = vrsqrt.pop %v1472
          %v1567 = vmul.f32 %v1472, %v1566
          %vm1568 = vcmp.eq.f32.partialorder %v1472, inf
          %v1569 = vsel %vm1568, %v1472, %v1567
          %vm1570 = vcmp.eq.f32.partialorder %v1472, 0.0
          %v1571 = vand.u32 %v1472, 2147483648
          %v1572 = vsel %vm1570, %v1571, %v1569
          %v1573 = vrsqrt.pop %v1473
          %v1574 = vmul.f32 %v1473, %v1573
          %vm1575 = vcmp.eq.f32.partialorder %v1473, inf
          %v1576 = vsel %vm1575, %v1473, %v1574
          %vm1577 = vcmp.eq.f32.partialorder %v1473, 0.0
          %v1578 = vand.u32 %v1473, 2147483648
          %v1579 = vsel %vm1577, %v1578, %v1576
          %v1580 = vrsqrt.pop %v1474
          %v1581 = vmul.f32 %v1474, %v1580
          %vm1582 = vcmp.eq.f32.partialorder %v1474, inf
          %v1583 = vsel %vm1582, %v1474, %v1581
          %vm1584 = vcmp.eq.f32.partialorder %v1474, 0.0
          %v1585 = vand.u32 %v1474, 2147483648
          %v1586 = vsel %vm1584, %v1585, %v1583
          %v1587 = vrcp.pop 1.4142135
          %v1588 = vmul.f32 %v1481, %v1587
          %v1589 = vmul.f32 %v1488, %v1587
          %v1590 = vmul.f32 %v1495, %v1587
          %v1591 = vmul.f32 %v1502, %v1587
          %v1592 = vmul.f32 %v1509, %v1587
          %v1593 = vmul.f32 %v1516, %v1587
          %v1594 = vmul.f32 %v1523, %v1587
          %v1595 = vmul.f32 %v1530, %v1587
          %v1596 = vmul.f32 %v1537, %v1587
          %v1597 = vmul.f32 %v1544, %v1587
          %v1598 = vmul.f32 %v1551, %v1587
          %v1599 = vmul.f32 %v1558, %v1587
          %v1600 = vmul.f32 %v1565, %v1587
          %v1601 = vmul.f32 %v1572, %v1587
          %v1602 = vmul.f32 %v1579, %v1587
          %v1603 = vmul.f32 %v1586, %v1587
          %v1604 = vmul.f32 %v1588, 1.442695
          %v1605 = vpow.pop %v1604
          %v1606 = vmul.f32 %v1589, 1.442695
          %v1607 = vpow.pop %v1606
          %v1608 = vmul.f32 %v1590, 1.442695
          %v1609 = vpow.pop %v1608
          %v1610 = vmul.f32 %v1591, 1.442695
          %v1611 = vpow.pop %v1610
          %v1612 = vmul.f32 %v1592, 1.442695
          %v1613 = vpow.pop %v1612
          %v1614 = vmul.f32 %v1593, 1.442695
          %v1615 = vpow.pop %v1614
          %v1616 = vmul.f32 %v1594, 1.442695
          %v1617 = vpow.pop %v1616
          %v1618 = vmul.f32 %v1595, 1.442695
          %v1619 = vpow.pop %v1618
          %v1620 = vmul.f32 %v1596, 1.442695
          %v1621 = vpow.pop %v1620
          %v1622 = vmul.f32 %v1597, 1.442695
          %v1623 = vpow.pop %v1622
          %v1624 = vmul.f32 %v1598, 1.442695
          %v1625 = vpow.pop %v1624
          %v1626 = vmul.f32 %v1599, 1.442695
          %v1627 = vpow.pop %v1626
          %v1628 = vmul.f32 %v1600, 1.442695
          %v1629 = vpow.pop %v1628
          %v1630 = vmul.f32 %v1601, 1.442695
          %v1631 = vpow.pop %v1630
          %v1632 = vmul.f32 %v1602, 1.442695
          %v1633 = vpow.pop %v1632
          %v1634 = vmul.f32 %v1603, 1.442695
          %v1635 = vpow.pop %v1634
          %v1636 = vsub.f32 0.0, %v1588
          %v1637 = vsub.f32 0.0, %v1589
          %v1638 = vsub.f32 0.0, %v1590
          %v1639 = vsub.f32 0.0, %v1591
          %v1640 = vsub.f32 0.0, %v1592
          %v1641 = vsub.f32 0.0, %v1593
          %v1642 = vsub.f32 0.0, %v1594
          %v1643 = vsub.f32 0.0, %v1595
          %v1644 = vsub.f32 0.0, %v1596
          %v1645 = vsub.f32 0.0, %v1597
          %v1646 = vsub.f32 0.0, %v1598
          %v1647 = vsub.f32 0.0, %v1599
          %v1648 = vsub.f32 0.0, %v1600
          %v1649 = vsub.f32 0.0, %v1601
          %v1650 = vsub.f32 0.0, %v1602
          %v1651 = vsub.f32 0.0, %v1603
          %v1652 = vmul.f32 %v1636, 1.442695
          %v1653 = vpow.pop %v1652
          %v1654 = vmul.f32 %v1637, 1.442695
          %v1655 = vpow.pop %v1654
          %v1656 = vmul.f32 %v1638, 1.442695
          %v1657 = vpow.pop %v1656
          %v1658 = vmul.f32 %v1639, 1.442695
          %v1659 = vpow.pop %v1658
          %v1660 = vmul.f32 %v1640, 1.442695
          %v1661 = vpow.pop %v1660
          %v1662 = vmul.f32 %v1641, 1.442695
          %v1663 = vpow.pop %v1662
          %v1664 = vmul.f32 %v1642, 1.442695
          %v1665 = vpow.pop %v1664
          %v1666 = vmul.f32 %v1643, 1.442695
          %v1667 = vpow.pop %v1666
          %v1668 = vmul.f32 %v1644, 1.442695
          %v1669 = vpow.pop %v1668
          %v1670 = vmul.f32 %v1645, 1.442695
          %v1671 = vpow.pop %v1670
          %v1672 = vmul.f32 %v1646, 1.442695
          %v1673 = vpow.pop %v1672
          %v1674 = vmul.f32 %v1647, 1.442695
          %v1675 = vpow.pop %v1674
          %v1676 = vmul.f32 %v1648, 1.442695
          %v1677 = vpow.pop %v1676
          %v1678 = vmul.f32 %v1649, 1.442695
          %v1679 = vpow.pop %v1678
          %v1680 = vmul.f32 %v1650, 1.442695
          %v1681 = vpow.pop %v1680
          %v1682 = vmul.f32 %v1651, 1.442695
          %v1683 = vpow.pop %v1682
          %v1684 = vsub.f32 %v1605, %v1653
          %v1685 = vsub.f32 %v1607, %v1655
          %v1686 = vsub.f32 %v1609, %v1657
          %v1687 = vsub.f32 %v1611, %v1659
          %v1688 = vsub.f32 %v1613, %v1661
          %v1689 = vsub.f32 %v1615, %v1663
          %v1690 = vsub.f32 %v1617, %v1665
          %v1691 = vsub.f32 %v1619, %v1667
          %v1692 = vsub.f32 %v1621, %v1669
          %v1693 = vsub.f32 %v1623, %v1671
          %v1694 = vsub.f32 %v1625, %v1673
          %v1695 = vsub.f32 %v1627, %v1675
          %v1696 = vsub.f32 %v1629, %v1677
          %v1697 = vsub.f32 %v1631, %v1679
          %v1698 = vsub.f32 %v1633, %v1681
          %v1699 = vsub.f32 %v1635, %v1683
          %v1700 = vmul.f32 %v1684, 0.5
          %v1701 = vmul.f32 %v1685, 0.5
          %v1702 = vmul.f32 %v1686, 0.5
          %v1703 = vmul.f32 %v1687, 0.5
          %v1704 = vmul.f32 %v1688, 0.5
          %v1705 = vmul.f32 %v1689, 0.5
          %v1706 = vmul.f32 %v1690, 0.5
          %v1707 = vmul.f32 %v1691, 0.5
          %v1708 = vmul.f32 %v1692, 0.5
          %v1709 = vmul.f32 %v1693, 0.5
          %v1710 = vmul.f32 %v1694, 0.5
          %v1711 = vmul.f32 %v1695, 0.5
          %v1712 = vmul.f32 %v1696, 0.5
          %v1713 = vmul.f32 %v1697, 0.5
          %v1714 = vmul.f32 %v1698, 0.5
          %v1715 = vmul.f32 %v1699, 0.5
          %v1716 = vmul.f32 %v1700, 1.4142135
          %v1717 = vmul.f32 %v1701, 1.4142135
          %v1718 = vmul.f32 %v1702, 1.4142135
          %v1719 = vmul.f32 %v1703, 1.4142135
          %v1720 = vmul.f32 %v1704, 1.4142135
          %v1721 = vmul.f32 %v1705, 1.4142135
          %v1722 = vmul.f32 %v1706, 1.4142135
          %v1723 = vmul.f32 %v1707, 1.4142135
          %v1724 = vmul.f32 %v1708, 1.4142135
          %v1725 = vmul.f32 %v1709, 1.4142135
          %v1726 = vmul.f32 %v1710, 1.4142135
          %v1727 = vmul.f32 %v1711, 1.4142135
          %v1728 = vmul.f32 %v1712, 1.4142135
          %v1729 = vmul.f32 %v1713, 1.4142135
          %v1730 = vmul.f32 %v1714, 1.4142135
          %v1731 = vmul.f32 %v1715, 1.4142135
          %v1732 = vrcp.pop %v1481
          %v1733 = vmul.f32 %v1716, %v1732
          %v1734 = vrcp.pop %v1488
          %v1735 = vmul.f32 %v1717, %v1734
          %v1736 = vrcp.pop %v1495
          %v1737 = vmul.f32 %v1718, %v1736
          %v1738 = vrcp.pop %v1502
          %v1739 = vmul.f32 %v1719, %v1738
          %v1740 = vrcp.pop %v1509
          %v1741 = vmul.f32 %v1720, %v1740
          %v1742 = vrcp.pop %v1516
          %v1743 = vmul.f32 %v1721, %v1742
          %v1744 = vrcp.pop %v1523
          %v1745 = vmul.f32 %v1722, %v1744
          %v1746 = vrcp.pop %v1530
          %v1747 = vmul.f32 %v1723, %v1746
          %v1748 = vrcp.pop %v1537
          %v1749 = vmul.f32 %v1724, %v1748
          %v1750 = vrcp.pop %v1544
          %v1751 = vmul.f32 %v1725, %v1750
          %v1752 = vrcp.pop %v1551
          %v1753 = vmul.f32 %v1726, %v1752
          %v1754 = vrcp.pop %v1558
          %v1755 = vmul.f32 %v1727, %v1754
          %v1756 = vrcp.pop %v1565
          %v1757 = vmul.f32 %v1728, %v1756
          %v1758 = vrcp.pop %v1572
          %v1759 = vmul.f32 %v1729, %v1758
          %v1760 = vrcp.pop %v1579
          %v1761 = vmul.f32 %v1730, %v1760
          %v1762 = vrcp.pop %v1586
          %v1763 = vmul.f32 %v1731, %v1762
          %v1764 = vmul.f32 %v1733, %v1395
          %v1765 = vmul.f32 %v1735, %v1396
          %v1766 = vmul.f32 %v1737, %v1397
          %v1767 = vmul.f32 %v1739, %v1398
          %v1768 = vmul.f32 %v1741, %v1399
          %v1769 = vmul.f32 %v1743, %v1400
          %v1770 = vmul.f32 %v1745, %v1401
          %v1771 = vmul.f32 %v1747, %v1402
          %v1772 = vmul.f32 %v1749, %v1403
          %v1773 = vmul.f32 %v1751, %v1404
          %v1774 = vmul.f32 %v1753, %v1405
          %v1775 = vmul.f32 %v1755, %v1406
          %v1776 = vmul.f32 %v1757, %v1407
          %v1777 = vmul.f32 %v1759, %v1408
          %v1778 = vmul.f32 %v1761, %v1409
          %v1779 = vmul.f32 %v1763, %v1410
          %v1780 = vmul.f32 %v1700, 2.0
          %v1781 = vmul.f32 %v1701, 2.0
          %v1782 = vmul.f32 %v1702, 2.0
          %v1783 = vmul.f32 %v1703, 2.0
          %v1784 = vmul.f32 %v1704, 2.0
          %v1785 = vmul.f32 %v1705, 2.0
          %v1786 = vmul.f32 %v1706, 2.0
          %v1787 = vmul.f32 %v1707, 2.0
          %v1788 = vmul.f32 %v1708, 2.0
          %v1789 = vmul.f32 %v1709, 2.0
          %v1790 = vmul.f32 %v1710, 2.0
          %v1791 = vmul.f32 %v1711, 2.0
          %v1792 = vmul.f32 %v1712, 2.0
          %v1793 = vmul.f32 %v1713, 2.0
          %v1794 = vmul.f32 %v1714, 2.0
          %v1795 = vmul.f32 %v1715, 2.0
          %v1796 = vmul.f32 %v1780, %v1700
          %v1797 = vmul.f32 %v1781, %v1701
          %v1798 = vmul.f32 %v1782, %v1702
          %v1799 = vmul.f32 %v1783, %v1703
          %v1800 = vmul.f32 %v1784, %v1704
          %v1801 = vmul.f32 %v1785, %v1705
          %v1802 = vmul.f32 %v1786, %v1706
          %v1803 = vmul.f32 %v1787, %v1707
          %v1804 = vmul.f32 %v1788, %v1708
          %v1805 = vmul.f32 %v1789, %v1709
          %v1806 = vmul.f32 %v1790, %v1710
          %v1807 = vmul.f32 %v1791, %v1711
          %v1808 = vmul.f32 %v1792, %v1712
          %v1809 = vmul.f32 %v1793, %v1713
          %v1810 = vmul.f32 %v1794, %v1714
          %v1811 = vmul.f32 %v1795, %v1715
          %v1812 = vrcp.pop %v1459
          %v1813 = vmul.f32 %v1428, %v1812
          %v1814 = vrcp.pop %v1460
          %v1815 = vmul.f32 %v1430, %v1814
          %v1816 = vrcp.pop %v1461
          %v1817 = vmul.f32 %v1432, %v1816
          %v1818 = vrcp.pop %v1462
          %v1819 = vmul.f32 %v1434, %v1818
          %v1820 = vrcp.pop %v1463
          %v1821 = vmul.f32 %v1436, %v1820
          %v1822 = vrcp.pop %v1464
          %v1823 = vmul.f32 %v1438, %v1822
          %v1824 = vrcp.pop %v1465
          %v1825 = vmul.f32 %v1440, %v1824
          %v1826 = vrcp.pop %v1466
          %v1827 = vmul.f32 %v1442, %v1826
          %v1828 = vrcp.pop %v1467
          %v1829 = vmul.f32 %v1444, %v1828
          %v1830 = vrcp.pop %v1468
          %v1831 = vmul.f32 %v1446, %v1830
          %v1832 = vrcp.pop %v1469
          %v1833 = vmul.f32 %v1448, %v1832
          %v1834 = vrcp.pop %v1470
          %v1835 = vmul.f32 %v1450, %v1834
          %v1836 = vrcp.pop %v1471
          %v1837 = vmul.f32 %v1452, %v1836
          %v1838 = vrcp.pop %v1472
          %v1839 = vmul.f32 %v1454, %v1838
          %v1840 = vrcp.pop %v1473
          %v1841 = vmul.f32 %v1456, %v1840
          %v1842 = vrcp.pop %v1474
          %v1843 = vmul.f32 %v1458, %v1842
          %v1844 = vmul.f32 %v1796, %v1813
          %v1845 = vmul.f32 %v1797, %v1815
          %v1846 = vmul.f32 %v1798, %v1817
          %v1847 = vmul.f32 %v1799, %v1819
          %v1848 = vmul.f32 %v1800, %v1821
          %v1849 = vmul.f32 %v1801, %v1823
          %v1850 = vmul.f32 %v1802, %v1825
          %v1851 = vmul.f32 %v1803, %v1827
          %v1852 = vmul.f32 %v1804, %v1829
          %v1853 = vmul.f32 %v1805, %v1831
          %v1854 = vmul.f32 %v1806, %v1833
          %v1855 = vmul.f32 %v1807, %v1835
          %v1856 = vmul.f32 %v1808, %v1837
          %v1857 = vmul.f32 %v1809, %v1839
          %v1858 = vmul.f32 %v1810, %v1841
          %v1859 = vmul.f32 %v1811, %v1843
          %v1860 = vadd.f32 %v1844, 2.0
          %v1861 = vadd.f32 %v1845, 2.0
          %v1862 = vadd.f32 %v1846, 2.0
          %v1863 = vadd.f32 %v1847, 2.0
          %v1864 = vadd.f32 %v1848, 2.0
          %v1865 = vadd.f32 %v1849, 2.0
          %v1866 = vadd.f32 %v1850, 2.0
          %v1867 = vadd.f32 %v1851, 2.0
          %v1868 = vadd.f32 %v1852, 2.0
          %v1869 = vadd.f32 %v1853, 2.0
          %v1870 = vadd.f32 %v1854, 2.0
          %v1871 = vadd.f32 %v1855, 2.0
          %v1872 = vadd.f32 %v1856, 2.0
          %v1873 = vadd.f32 %v1857, 2.0
          %v1874 = vadd.f32 %v1858, 2.0
          %v1875 = vadd.f32 %v1859, 2.0
          %v1876 = vmax.f32 %v1860, 1e-06
          %v1877 = vmax.f32 %v1861, 1e-06
          %v1878 = vmax.f32 %v1862, 1e-06
          %v1879 = vmax.f32 %v1863, 1e-06
          %v1880 = vmax.f32 %v1864, 1e-06
          %v1881 = vmax.f32 %v1865, 1e-06
          %v1882 = vmax.f32 %v1866, 1e-06
          %v1883 = vmax.f32 %v1867, 1e-06
          %v1884 = vmax.f32 %v1868, 1e-06
          %v1885 = vmax.f32 %v1869, 1e-06
          %v1886 = vmax.f32 %v1870, 1e-06
          %v1887 = vmax.f32 %v1871, 1e-06
          %v1888 = vmax.f32 %v1872, 1e-06
          %v1889 = vmax.f32 %v1873, 1e-06
          %v1890 = vmax.f32 %v1874, 1e-06
          %v1891 = vmax.f32 %v1875, 1e-06
          %v1892 = vrsqrt.pop %v1876
          %v1893 = vmul.f32 %v1876, %v1892
          %vm1894 = vcmp.eq.f32.partialorder %v1876, inf
          %v1895 = vsel %vm1894, %v1876, %v1893
          %vm1896 = vcmp.eq.f32.partialorder %v1876, 0.0
          %v1897 = vand.u32 %v1876, 2147483648
          %v1898 = vsel %vm1896, %v1897, %v1895
          %v1899 = vrsqrt.pop %v1877
          %v1900 = vmul.f32 %v1877, %v1899
          %vm1901 = vcmp.eq.f32.partialorder %v1877, inf
          %v1902 = vsel %vm1901, %v1877, %v1900
          %vm1903 = vcmp.eq.f32.partialorder %v1877, 0.0
          %v1904 = vand.u32 %v1877, 2147483648
          %v1905 = vsel %vm1903, %v1904, %v1902
          %v1906 = vrsqrt.pop %v1878
          %v1907 = vmul.f32 %v1878, %v1906
          %vm1908 = vcmp.eq.f32.partialorder %v1878, inf
          %v1909 = vsel %vm1908, %v1878, %v1907
          %vm1910 = vcmp.eq.f32.partialorder %v1878, 0.0
          %v1911 = vand.u32 %v1878, 2147483648
          %v1912 = vsel %vm1910, %v1911, %v1909
          %v1913 = vrsqrt.pop %v1879
          %v1914 = vmul.f32 %v1879, %v1913
          %vm1915 = vcmp.eq.f32.partialorder %v1879, inf
          %v1916 = vsel %vm1915, %v1879, %v1914
          %vm1917 = vcmp.eq.f32.partialorder %v1879, 0.0
          %v1918 = vand.u32 %v1879, 2147483648
          %v1919 = vsel %vm1917, %v1918, %v1916
          %v1920 = vrsqrt.pop %v1880
          %v1921 = vmul.f32 %v1880, %v1920
          %vm1922 = vcmp.eq.f32.partialorder %v1880, inf
          %v1923 = vsel %vm1922, %v1880, %v1921
          %vm1924 = vcmp.eq.f32.partialorder %v1880, 0.0
          %v1925 = vand.u32 %v1880, 2147483648
          %v1926 = vsel %vm1924, %v1925, %v1923
          %v1927 = vrsqrt.pop %v1881
          %v1928 = vmul.f32 %v1881, %v1927
          %vm1929 = vcmp.eq.f32.partialorder %v1881, inf
          %v1930 = vsel %vm1929, %v1881, %v1928
          %vm1931 = vcmp.eq.f32.partialorder %v1881, 0.0
          %v1932 = vand.u32 %v1881, 2147483648
          %v1933 = vsel %vm1931, %v1932, %v1930
          %v1934 = vrsqrt.pop %v1882
          %v1935 = vmul.f32 %v1882, %v1934
          %vm1936 = vcmp.eq.f32.partialorder %v1882, inf
          %v1937 = vsel %vm1936, %v1882, %v1935
          %vm1938 = vcmp.eq.f32.partialorder %v1882, 0.0
          %v1939 = vand.u32 %v1882, 2147483648
          %v1940 = vsel %vm1938, %v1939, %v1937
          %v1941 = vrsqrt.pop %v1883
          %v1942 = vmul.f32 %v1883, %v1941
          %vm1943 = vcmp.eq.f32.partialorder %v1883, inf
          %v1944 = vsel %vm1943, %v1883, %v1942
          %vm1945 = vcmp.eq.f32.partialorder %v1883, 0.0
          %v1946 = vand.u32 %v1883, 2147483648
          %v1947 = vsel %vm1945, %v1946, %v1944
          %v1948 = vrsqrt.pop %v1884
          %v1949 = vmul.f32 %v1884, %v1948
          %vm1950 = vcmp.eq.f32.partialorder %v1884, inf
          %v1951 = vsel %vm1950, %v1884, %v1949
          %vm1952 = vcmp.eq.f32.partialorder %v1884, 0.0
          %v1953 = vand.u32 %v1884, 2147483648
          %v1954 = vsel %vm1952, %v1953, %v1951
          %v1955 = vrsqrt.pop %v1885
          %v1956 = vmul.f32 %v1885, %v1955
          %vm1957 = vcmp.eq.f32.partialorder %v1885, inf
          %v1958 = vsel %vm1957, %v1885, %v1956
          %vm1959 = vcmp.eq.f32.partialorder %v1885, 0.0
          %v1960 = vand.u32 %v1885, 2147483648
          %v1961 = vsel %vm1959, %v1960, %v1958
          %v1962 = vrsqrt.pop %v1886
          %v1963 = vmul.f32 %v1886, %v1962
          %vm1964 = vcmp.eq.f32.partialorder %v1886, inf
          %v1965 = vsel %vm1964, %v1886, %v1963
          %vm1966 = vcmp.eq.f32.partialorder %v1886, 0.0
          %v1967 = vand.u32 %v1886, 2147483648
          %v1968 = vsel %vm1966, %v1967, %v1965
          %v1969 = vrsqrt.pop %v1887
          %v1970 = vmul.f32 %v1887, %v1969
          %vm1971 = vcmp.eq.f32.partialorder %v1887, inf
          %v1972 = vsel %vm1971, %v1887, %v1970
          %vm1973 = vcmp.eq.f32.partialorder %v1887, 0.0
          %v1974 = vand.u32 %v1887, 2147483648
          %v1975 = vsel %vm1973, %v1974, %v1972
          %v1976 = vrsqrt.pop %v1888
          %v1977 = vmul.f32 %v1888, %v1976
          %vm1978 = vcmp.eq.f32.partialorder %v1888, inf
          %v1979 = vsel %vm1978, %v1888, %v1977
          %vm1980 = vcmp.eq.f32.partialorder %v1888, 0.0
          %v1981 = vand.u32 %v1888, 2147483648
          %v1982 = vsel %vm1980, %v1981, %v1979
          %v1983 = vrsqrt.pop %v1889
          %v1984 = vmul.f32 %v1889, %v1983
          %vm1985 = vcmp.eq.f32.partialorder %v1889, inf
          %v1986 = vsel %vm1985, %v1889, %v1984
          %vm1987 = vcmp.eq.f32.partialorder %v1889, 0.0
          %v1988 = vand.u32 %v1889, 2147483648
          %v1989 = vsel %vm1987, %v1988, %v1986
          %v1990 = vrsqrt.pop %v1890
          %v1991 = vmul.f32 %v1890, %v1990
          %vm1992 = vcmp.eq.f32.partialorder %v1890, inf
          %v1993 = vsel %vm1992, %v1890, %v1991
          %vm1994 = vcmp.eq.f32.partialorder %v1890, 0.0
          %v1995 = vand.u32 %v1890, 2147483648
          %v1996 = vsel %vm1994, %v1995, %v1993
          %v1997 = vrsqrt.pop %v1891
          %v1998 = vmul.f32 %v1891, %v1997
          %vm1999 = vcmp.eq.f32.partialorder %v1891, inf
          %v2000 = vsel %vm1999, %v1891, %v1998
          %vm2001 = vcmp.eq.f32.partialorder %v1891, 0.0
          %v2002 = vand.u32 %v1891, 2147483648
          %v2003 = vsel %vm2001, %v2002, %v2000
          %v2004 = vsel %vm379, %v1898, %v1764
          %v2005 = vsel %vm379, %v1905, %v1765
          %v2006 = vsel %vm379, %v1912, %v1766
          %v2007 = vsel %vm379, %v1919, %v1767
          %v2008 = vsel %vm379, %v1926, %v1768
          %v2009 = vsel %vm379, %v1933, %v1769
          %v2010 = vsel %vm379, %v1940, %v1770
          %v2011 = vsel %vm379, %v1947, %v1771
          %v2012 = vsel %vm379, %v1954, %v1772
          %v2013 = vsel %vm379, %v1961, %v1773
          %v2014 = vsel %vm379, %v1968, %v1774
          %v2015 = vsel %vm379, %v1975, %v1775
          %v2016 = vsel %vm379, %v1982, %v1776
          %v2017 = vsel %vm379, %v1989, %v1777
          %v2018 = vsel %vm379, %v1996, %v1778
          %v2019 = vsel %vm379, %v2003, %v1779
          %2020 = vst [vmem:[%s331] sm:$0xff] %v2004
          %2021 = vst [vmem:[%s331 + $0x8] sm:$0xff] %v2005
          %2022 = vst [vmem:[%s331 + $0x10] sm:$0xff] %v2006
          %2023 = vst [vmem:[%s331 + $0x18] sm:$0xff] %v2007
          %2024 = vst [vmem:[%s331 + $0x20] sm:$0xff] %v2008
          %2025 = vst [vmem:[%s331 + $0x28] sm:$0xff] %v2009
          %2026 = vst [vmem:[%s331 + $0x30] sm:$0xff] %v2010
          %2027 = vst [vmem:[%s331 + $0x38] sm:$0xff] %v2011
          %2028 = vst [vmem:[%s331 + $0x40] sm:$0xff] %v2012
          %2029 = vst [vmem:[%s331 + $0x48] sm:$0xff] %v2013
          %2030 = vst [vmem:[%s331 + $0x50] sm:$0xff] %v2014
          %2031 = vst [vmem:[%s331 + $0x58] sm:$0xff] %v2015
          %2032 = vst [vmem:[%s331 + $0x60] sm:$0xff] %v2016
          %2033 = vst [vmem:[%s331 + $0x68] sm:$0xff] %v2017
          %2034 = vst [vmem:[%s331 + $0x70] sm:$0xff] %v2018
          %2035 = vst [vmem:[%s331 + $0x78] sm:$0xff] %v2019
        $region85: #{tpu_custom_call.1} parent=72 // pred_fallthru
          _
        %s2036 = sand.u32 %s134, 1
        %s2037 = scalar_lea.sflag [#allocation5], %s2036
        %s2038 = sand.u32 %s134, 1
        %s2039 = smul.addr %s2038, 128
        %s2040 = scalar_lea.vmem [#allocation4], %s2039
        // Predicated region
        $region86: #{tpu_custom_call.1} parent=72 // pred_check
          %p2041 = pneg %p144
        $region87: #{tpu_custom_call.1} parent=72 // pred_check_branch
          %2043 = sbr.rel (%p2041) target = $region89
        $region88: #{tpu_custom_call.1} parent=72 // pred_region
          %s2044 = smul.u32 16, %s22
          %s2046 = ssub.s32 2048, 2048
          %2047 = vsyncadd %s2037, %s2046
          %s2048 = smul.addr %s2044, 128
          %s2049 = scalar_lea.hbm %s4, %s2048
          %s2050 = sshll.u32 %s2040, 4
          %s2051 = int_to_ptr.vmem [resolvable:$true] %s2050
          %2056 = dma.vmem_to_hbm [thread:$0]  %s2051, 2048, %s2049, %s2037, 128, 128, 8
        $region89: #{tpu_custom_call.1} parent=72 // pred_fallthru
          _
      $region73: #{tpu_custom_call.1} parent=5 // pred_fallthru
        _
      %p2057 = scmp.le.s32.totalorder 2, %s13
      // Predicated region
      $region90: #{tpu_custom_call.1} parent=5 // pred_check
        %p2058 = pneg %p2057
      $region91: #{tpu_custom_call.1} parent=5 // pred_check_branch
        %2060 = sbr.rel (%p2058) target = $region93
      $region92: #{tpu_custom_call.1} parent=5 // pred_region
        %s2061 = ssub.s32 %s13, 2
        // Predicated region
        $region94: #{tpu_custom_call.1} parent=92 // pred_check
          %p2062 = pneg %p150
        $region95: #{tpu_custom_call.1} parent=92 // pred_check_branch
          %2064 = sbr.rel (%p2062) target = $region97
        $region96: #{tpu_custom_call.1} parent=92 // pred_region
          %s2065 = sand.u32 %s135, 1
          %s2066 = scalar_lea.sflag [#allocation5], %s2065
          %s2067 = sand.u32 %s135, 1
          %s2068 = smul.addr %s2067, 128
          %s2069 = scalar_lea.vmem [#allocation4], %s2068
          %2070 = dma.done %s2066, 2048
        $region97: #{tpu_custom_call.1} parent=92 // pred_fallthru
          _
      $region93: #{tpu_custom_call.1} parent=5 // pred_fallthru
        _
    $region6: #{tpu_custom_call.1} parent=1 // loop_footer
      %s17 = sadd.s32 1, %s13
    $region7: #{tpu_custom_call.1} parent=1 // loop_footer_branch
      %12 = sbr.rel target = $region3
    $region8: #{tpu_custom_call.1} parent=1 // loop_exit
      _
    %2071 = vsyncpa [#allocation5], 1
    %s2072 = scalar_lea.sflag [#allocation5], 1
    %2073 = vsyncpa %s2072, 1

</llo_original>
